<compile_context>
chip_gen: v5e
topology: v5e:2x2
jax: 0.10.0
libtpu: 0.0.40
codegen_flags: <defaults>
</compile_context>

<pallas_src>
import numpy as np
import jax
import jax.numpy as jnp
from jax.experimental import pallas as pl
from jax.experimental.pallas import tpu as pltpu


# Network geometry fixed by the PyTorch module (1x8x8 input, fc1 expects 2*2*64).
_H1, _W1, _C0, _C1 = 8, 8, 1, 32            # conv1 input spatial / in / out channels
_H2, _W2, _C2 = 4, 4, 64                    # conv2 input spatial / out channels
_K, _PAD = 5, 2
_CONV1_COLS = 4 * (_H1 // 2) * (_W1 // 2) * _C1      # 2048 = (dy,dx,oy,ox,c)
_POOL1_COLS = _CONV1_COLS // 4                       # 512
_CONV2_COLS = 4 * (_H2 // 2) * (_W2 // 2) * _C2      # 1024
_POOL2_COLS = _CONV2_COLS // 4                       # 256
_FC1_OUT = 128


# ------------------------------ fused kernel ------------------------------- #

def _fused_forward_kernel(x_ref, t1_ref, b1_ref, t2_ref, b2_ref,
                          wf1_ref, bf1_ref, wf2_ref, bf2_ref, o_ref):
    # conv1 + bias + relu: single MXU matmul against block-Toeplitz weights.
    h1 = jnp.dot(x_ref[...], t1_ref[...], preferred_element_type=jnp.float32)
    h1 = jnp.maximum(h1 + b1_ref[...], 0.0)
    # 2x2 max-pool == elementwise max of the four (dy, dx) lane blocks (aligned
    # 512-wide slices, multiples of 128 -> no relayout, pure VPU).
    s = _POOL1_COLS
    p1 = jnp.maximum(jnp.maximum(h1[:, 0:s], h1[:, s:2 * s]),
                     jnp.maximum(h1[:, 2 * s:3 * s], h1[:, 3 * s:4 * s]))
    # conv2 + bias + relu (Toeplitz matmul, K=512).
    h2 = jnp.dot(p1, t2_ref[...], preferred_element_type=jnp.float32)
    h2 = jnp.maximum(h2 + b2_ref[...], 0.0)
    s = _POOL2_COLS
    p2 = jnp.maximum(jnp.maximum(h2[:, 0:s], h2[:, s:2 * s]),
                     jnp.maximum(h2[:, 2 * s:3 * s], h2[:, 3 * s:4 * s]))
    # fc1 + relu (fc1 weight was pre-permuted to the kernel's (y, x, c) order).
    h3 = jnp.dot(p2, wf1_ref[...], preferred_element_type=jnp.float32)
    h3 = jnp.maximum(h3 + bf1_ref[...], 0.0)
    # fc2 (N_out = 1 -> lane reduction, skip the MXU) + sigmoid on the EUP.
    z = jnp.sum(h3 * wf2_ref[...], axis=-1, keepdims=True) + bf2_ref[...]
    sig = pl.reciprocal(1.0 + jnp.exp(-z), approx=True)
    o_ref[...] = jnp.minimum(sig, 1.0)   # guard approx-rcp overshoot above 1.0


# ----------------------- one-time offline weight prep ---------------------- #

def init_params(key):
    """Deterministic synthetic parameters in the PyTorch layouts/init scheme."""
    ks = jax.random.split(key, 8)

    def u(k, shape, fan_in):
        bound = 1.0 / np.sqrt(float(fan_in))
        return jax.random.uniform(k, shape, jnp.float32, -bound, bound)

    return dict(
        w1=u(ks[0], (32, 1, 5, 5), 25),        b1=u(ks[1], (32,), 25),
        w2=u(ks[2], (64, 32, 5, 5), 32 * 25),  b2=u(ks[3], (64,), 32 * 25),
        wfc1=u(ks[4], (128, 256), 256),        bfc1=u(ks[5], (128,), 256),
        wfc2=u(ks[6], (1, 128), 128),          bfc2=u(ks[7], (1,), 128),
    )


def _conv_pool_toeplitz(w_oihw, in_h, in_w, pad):
    """Block-Toeplitz matrix for a 'same'-padded KxK conv.

    Input rows are the (iy, ix, c_in) row-major flattened input map (zero padding
    is absorbed: out-of-range taps are omitted).  Output columns are ordered
    (dy, dx, oy, ox, c_out) so the following 2x2/stride-2 max-pool is an
    elementwise max of four contiguous lane slices."""
    c_out, c_in, k, _ = w_oihw.shape
    o_h, o_w = in_h // 2, in_w // 2
    t = np.zeros((in_h, in_w, c_in, 2, 2, o_h, o_w, c_out), np.float32)
    for dy in range(2):
        for dx in range(2):
            for oy in range(o_h):
                for ox in range(o_w):
                    y, x = 2 * oy + dy, 2 * ox + dx
                    for kh in range(k):
                        iy = y + kh - pad
                        if not 0 <= iy < in_h:
                            continue
                        for kw in range(k):
                            ix = x + kw - pad
                            if not 0 <= ix < in_w:
                                continue
                            t[iy, ix, :, dy, dx, oy, ox, :] = w_oihw[:, :, kh, kw].T
    return t.reshape(in_h * in_w * c_in, 4 * o_h * o_w * c_out)


def prepare_kernel_params(params):
    """One-time transform of torch-layout weights into the fused-kernel matrices."""
    p = {k: np.asarray(v, np.float32) for k, v in params.items()}
    t1 = _conv_pool_toeplitz(p["w1"], _H1, _W1, _PAD)          # (64, 2048)
    t2 = _conv_pool_toeplitz(p["w2"], _H2, _W2, _PAD)          # (512, 1024)
    b1 = np.tile(p["b1"], _CONV1_COLS // _C1)[None, :]         # (1, 2048), c innermost
    b2 = np.tile(p["b2"], _CONV2_COLS // _C2)[None, :]         # (1, 1024)
    # Kernel's p2 lanes are (y, x, c); torch's .view(-1, 256) flattens (c, y, x).
    j = np.arange(_POOL2_COLS)
    perm = (j % _C2) * (_POOL2_COLS // _C2) + j // _C2         # kernel idx -> torch idx
    wf1 = p["wfc1"].T[perm]                                    # (256, 128)
    bf1 = p["bfc1"][None, :]                                   # (1, 128)
    wf2 = p["wfc2"]                                            # (1, 128)
    bf2 = p["bfc2"][None, :]                                   # (1, 1)
    return {k: jnp.asarray(v) for k, v in dict(
        t1=t1, b1=b1, t2=t2, b2=b2, wf1=wf1, bf1=bf1, wf2=wf2, bf2=bf2).items()}


# --------------------------------- wrapper --------------------------------- #

def _round_up(v, m):
    return (v + m - 1) // m * m


def neuron_net_forward(x, kparams, *, batch_tile=256):
    """x: (N, 1, 8, 8) NCHW, like PyTorch.  Returns (N, 1) sigmoid outputs."""
    n = x.shape[0]
    assert x.shape[1:] == (_C0, _H1, _W1), x.shape
    x2d = x.astype(jnp.float32).reshape(n, _H1 * _W1)        # rows = images, lanes = (iy, ix)

    bt = min(batch_tile, _round_up(n, 8))                    # batch tile (multiple of 8)
    n_pad = _round_up(n, bt)
    if n_pad != n:
        x2d = jnp.pad(x2d, ((0, n_pad - n), (0, 0)))

    const = lambda i: (0, 0)                                 # weights stay resident in VMEM
    out = pl.pallas_call(
        _fused_forward_kernel,
        out_shape=jax.ShapeDtypeStruct((n_pad, 1), jnp.float32),
        grid_spec=pltpu.PrefetchScalarGridSpec(
            num_scalar_prefetch=0,
            grid=(n_pad // bt,),
            in_specs=[
                pl.BlockSpec((bt, _H1 * _W1), lambda i: (i, 0)),   # input tile (streamed)
                pl.BlockSpec((_H1 * _W1, _CONV1_COLS), const),     # T1   (64, 2048)
                pl.BlockSpec((1, _CONV1_COLS), const),             # b1   (1, 2048)
                pl.BlockSpec((_POOL1_COLS, _CONV2_COLS), const),   # T2   (512, 1024)
                pl.BlockSpec((1, _CONV2_COLS), const),             # b2   (1, 1024)
                pl.BlockSpec((_POOL2_COLS, _FC1_OUT), const),      # wf1  (256, 128)
                pl.BlockSpec((1, _FC1_OUT), const),                # bf1  (1, 128)
                pl.BlockSpec((1, _FC1_OUT), const),                # wf2  (1, 128)
                pl.BlockSpec((1, 1), const),                       # bf2  (1, 1)
            ],
            out_specs=pl.BlockSpec((bt, 1), lambda i: (i, 0)),
        ),
        compiler_params=pltpu.CompilerParams(
            dimension_semantics=("parallel",),         # 2 TensorCores on v7x
            vmem_limit_bytes=32 * 1024 * 1024,         # safe on v5e/v6e/v7x at bt<=256
        ),
    )(x2d, kparams["t1"], kparams["b1"], kparams["t2"], kparams["b2"],
      kparams["wf1"], kparams["bf1"], kparams["wf2"], kparams["bf2"])
    return out[:n]


# ----------------------------- pure-JAX reference --------------------------- #

def reference_forward(x, p):
    """XLA reference with the exact PyTorch semantics (for correctness check)."""
    x = x.astype(jnp.float32)
    dn = ("NCHW", "OIHW", "NCHW")
    h = jax.lax.conv_general_dilated(x, p["w1"], (1, 1), ((2, 2), (2, 2)),
                                     dimension_numbers=dn)
    h = jnp.maximum(h + p["b1"][None, :, None, None], 0.0)
    h = jax.lax.reduce_window(h, -jnp.inf, jax.lax.max,
                              (1, 1, 2, 2), (1, 1, 2, 2), "VALID")
    h = jax.lax.conv_general_dilated(h, p["w2"], (1, 1), ((2, 2), (2, 2)),
                                     dimension_numbers=dn)
    h = jnp.maximum(h + p["b2"][None, :, None, None], 0.0)
    h = jax.lax.reduce_window(h, -jnp.inf, jax.lax.max,
                              (1, 1, 2, 2), (1, 1, 2, 2), "VALID")
    f = h.reshape(h.shape[0], 2 * 2 * 64)
    f = jnp.maximum(f @ p["wfc1"].T + p["bfc1"], 0.0)
    z = f @ p["wfc2"].T + p["bfc2"]
    return 1.0 / (1.0 + jnp.exp(-z))


if __name__ == "__main__":
    key = jax.random.PRNGKey(0)
    kx, kp = jax.random.split(key)
    # fc1 expects 2*2*64 = 256 features => input must be (N, 1, 8, 8).
    x = jax.random.normal(kx, (2, 1, 8, 8), jnp.float32)
    params = init_params(kp)
    kparams = prepare_kernel_params(params)

    out = jax.block_until_ready(neuron_net_forward(x, kparams))
    assert out.shape == (2, 1)
    assert bool(jnp.all(jnp.isfinite(out)))
    assert bool(jnp.all((out >= 0.0) & (out <= 1.0)))

    ref = reference_forward(x, params)
    assert bool(jnp.all(jnp.abs(out - ref) < 5e-3)), (out, ref)
    print("KERNEL_OK")
</pallas_src>

<mosaic_0001>
module attributes {stable_mosaic.version = 11 : i64} {
  func.func @_fused_forward_kernel(%arg0: i32, %arg1: memref<8x64xf32, #tpu.memory_space<vmem>>, %arg2: memref<64x2048xf32, #tpu.memory_space<vmem>>, %arg3: memref<1x2048xf32, #tpu.memory_space<vmem>>, %arg4: memref<512x1024xf32, #tpu.memory_space<vmem>>, %arg5: memref<1x1024xf32, #tpu.memory_space<vmem>>, %arg6: memref<256x128xf32, #tpu.memory_space<vmem>>, %arg7: memref<1x128xf32, #tpu.memory_space<vmem>>, %arg8: memref<1x128xf32, #tpu.memory_space<vmem>>, %arg9: memref<1x1xf32, #tpu.memory_space<vmem>>, %arg10: memref<8x1xf32, #tpu.memory_space<vmem>>) attributes {dimension_semantics = [#tpu.dimension_semantics<parallel>], iteration_bounds = array<i64: 1>, scalar_prefetch = 0 : i64, scratch_operands = 0 : i64, tpu.core_type = #tpu.core_type<tc>, window_params = [{transform_indices = @transform_0, window_bounds = array<i64: 8, 64>}, {pipeline_mode = #tpu.pipeline_mode<synchronous>, transform_indices = @transform_1, window_bounds = array<i64: 64, 2048>}, {pipeline_mode = #tpu.pipeline_mode<synchronous>, transform_indices = @transform_2, window_bounds = array<i64: 1, 2048>}, {pipeline_mode = #tpu.pipeline_mode<synchronous>, transform_indices = @transform_3, window_bounds = array<i64: 512, 1024>}, {pipeline_mode = #tpu.pipeline_mode<synchronous>, transform_indices = @transform_4, window_bounds = array<i64: 1, 1024>}, {pipeline_mode = #tpu.pipeline_mode<synchronous>, transform_indices = @transform_5, window_bounds = array<i64: 256, 128>}, {pipeline_mode = #tpu.pipeline_mode<synchronous>, transform_indices = @transform_6, window_bounds = array<i64: 1, 128>}, {pipeline_mode = #tpu.pipeline_mode<synchronous>, transform_indices = @transform_7, window_bounds = array<i64: 1, 128>}, {pipeline_mode = #tpu.pipeline_mode<synchronous>, transform_indices = @transform_8, window_bounds = array<i64: 1, 1>}, {transform_indices = @transform_9, window_bounds = array<i64: 8, 1>}]} {
    %c0 = arith.constant 0 : index
    %c0_0 = arith.constant 0 : index
    %0 = vector.load %arg1[%c0, %c0_0] : memref<8x64xf32, #tpu.memory_space<vmem>>, vector<8x64xf32>
    %c0_1 = arith.constant 0 : index
    %c0_2 = arith.constant 0 : index
    %1 = vector.load %arg2[%c0_1, %c0_2] : memref<64x2048xf32, #tpu.memory_space<vmem>>, vector<64x2048xf32>
    %cst = arith.constant dense<0.000000e+00> : vector<8x2048xf32>
    %2 = tpu.matmul %0, %1, %cst {dimension_numbers = #tpu.dot_dimension_numbers<[1], [0], [0], [1], [0, 0, 1, 1], [], []>} : vector<8x64xf32>, vector<64x2048xf32>, vector<8x2048xf32> -> vector<8x2048xf32>
    %c0_3 = arith.constant 0 : index
    %c0_4 = arith.constant 0 : index
    %3 = vector.load %arg3[%c0_3, %c0_4] : memref<1x2048xf32, #tpu.memory_space<vmem>>, vector<1x2048xf32>
    %4 = vector.broadcast %3 : vector<1x2048xf32> to vector<8x2048xf32>
    %5 = arith.addf %2, %4 : vector<8x2048xf32>
    %cst_5 = arith.constant 0.000000e+00 : f32
    %6 = vector.broadcast %cst_5 : f32 to vector<8x2048xf32>
    %7 = arith.maximumf %5, %6 : vector<8x2048xf32>
    %8 = vector.extract_strided_slice %7 {offsets = [0, 0], sizes = [8, 512], strides = [1, 1]} : vector<8x2048xf32> to vector<8x512xf32>
    %9 = vector.extract_strided_slice %7 {offsets = [0, 512], sizes = [8, 512], strides = [1, 1]} : vector<8x2048xf32> to vector<8x512xf32>
    %10 = arith.maximumf %8, %9 : vector<8x512xf32>
    %11 = vector.extract_strided_slice %7 {offsets = [0, 1024], sizes = [8, 512], strides = [1, 1]} : vector<8x2048xf32> to vector<8x512xf32>
    %12 = vector.extract_strided_slice %7 {offsets = [0, 1536], sizes = [8, 512], strides = [1, 1]} : vector<8x2048xf32> to vector<8x512xf32>
    %13 = arith.maximumf %11, %12 : vector<8x512xf32>
    %14 = arith.maximumf %10, %13 : vector<8x512xf32>
    %c0_6 = arith.constant 0 : index
    %c0_7 = arith.constant 0 : index
    %15 = vector.load %arg4[%c0_6, %c0_7] : memref<512x1024xf32, #tpu.memory_space<vmem>>, vector<512x1024xf32>
    %cst_8 = arith.constant dense<0.000000e+00> : vector<8x1024xf32>
    %16 = tpu.matmul %14, %15, %cst_8 {dimension_numbers = #tpu.dot_dimension_numbers<[1], [0], [0], [1], [0, 0, 1, 1], [], []>} : vector<8x512xf32>, vector<512x1024xf32>, vector<8x1024xf32> -> vector<8x1024xf32>
    %c0_9 = arith.constant 0 : index
    %c0_10 = arith.constant 0 : index
    %17 = vector.load %arg5[%c0_9, %c0_10] : memref<1x1024xf32, #tpu.memory_space<vmem>>, vector<1x1024xf32>
    %18 = vector.broadcast %17 : vector<1x1024xf32> to vector<8x1024xf32>
    %19 = arith.addf %16, %18 : vector<8x1024xf32>
    %cst_11 = arith.constant 0.000000e+00 : f32
    %20 = vector.broadcast %cst_11 : f32 to vector<8x1024xf32>
    %21 = arith.maximumf %19, %20 : vector<8x1024xf32>
    %22 = vector.extract_strided_slice %21 {offsets = [0, 0], sizes = [8, 256], strides = [1, 1]} : vector<8x1024xf32> to vector<8x256xf32>
    %23 = vector.extract_strided_slice %21 {offsets = [0, 256], sizes = [8, 256], strides = [1, 1]} : vector<8x1024xf32> to vector<8x256xf32>
    %24 = arith.maximumf %22, %23 : vector<8x256xf32>
    %25 = vector.extract_strided_slice %21 {offsets = [0, 512], sizes = [8, 256], strides = [1, 1]} : vector<8x1024xf32> to vector<8x256xf32>
    %26 = vector.extract_strided_slice %21 {offsets = [0, 768], sizes = [8, 256], strides = [1, 1]} : vector<8x1024xf32> to vector<8x256xf32>
    %27 = arith.maximumf %25, %26 : vector<8x256xf32>
    %28 = arith.maximumf %24, %27 : vector<8x256xf32>
    %c0_12 = arith.constant 0 : index
    %c0_13 = arith.constant 0 : index
    %29 = vector.load %arg6[%c0_12, %c0_13] : memref<256x128xf32, #tpu.memory_space<vmem>>, vector<256x128xf32>
    %cst_14 = arith.constant dense<0.000000e+00> : vector<8x128xf32>
    %30 = tpu.matmul %28, %29, %cst_14 {dimension_numbers = #tpu.dot_dimension_numbers<[1], [0], [0], [1], [0, 0, 1, 1], [], []>} : vector<8x256xf32>, vector<256x128xf32>, vector<8x128xf32> -> vector<8x128xf32>
    %c0_15 = arith.constant 0 : index
    %c0_16 = arith.constant 0 : index
    %31 = vector.load %arg7[%c0_15, %c0_16] : memref<1x128xf32, #tpu.memory_space<vmem>>, vector<1x128xf32>
    %32 = vector.broadcast %31 : vector<1x128xf32> to vector<8x128xf32>
    %33 = arith.addf %30, %32 : vector<8x128xf32>
    %cst_17 = arith.constant 0.000000e+00 : f32
    %34 = vector.broadcast %cst_17 : f32 to vector<8x128xf32>
    %35 = arith.maximumf %33, %34 : vector<8x128xf32>
    %c0_18 = arith.constant 0 : index
    %c0_19 = arith.constant 0 : index
    %36 = vector.load %arg8[%c0_18, %c0_19] : memref<1x128xf32, #tpu.memory_space<vmem>>, vector<1x128xf32>
    %37 = vector.broadcast %36 : vector<1x128xf32> to vector<8x128xf32>
    %38 = arith.mulf %35, %37 : vector<8x128xf32>
    %cst_20 = arith.constant dense<0.000000e+00> : vector<8xf32>
    %39 = vector.multi_reduction <add>, %38, %cst_20 [1] : vector<8x128xf32> to vector<8xf32>
    %40 = vector.shape_cast %39 : vector<8xf32> to vector<8x1xf32>
    %c0_21 = arith.constant 0 : index
    %c0_22 = arith.constant 0 : index
    %41 = vector.load %arg9[%c0_21, %c0_22] : memref<1x1xf32, #tpu.memory_space<vmem>>, vector<1x1xf32>
    %42 = vector.broadcast %41 : vector<1x1xf32> to vector<8x1xf32>
    %43 = arith.addf %40, %42 : vector<8x1xf32>
    %cst_23 = arith.constant 0.000000e+00 : f32
    %44 = vector.broadcast %cst_23 : f32 to vector<8x1xf32>
    %45 = arith.subf %44, %43 : vector<8x1xf32>
    %46 = math.exp %45 : vector<8x1xf32>
    %cst_24 = arith.constant 1.000000e+00 : f32
    %47 = vector.broadcast %cst_24 : f32 to vector<8x1xf32>
    %48 = arith.addf %47, %46 : vector<8x1xf32>
    %49 = tpu.reciprocal %48 {approx = true} : vector<8x1xf32> -> vector<8x1xf32>
    %cst_25 = arith.constant 1.000000e+00 : f32
    %50 = vector.broadcast %cst_25 : f32 to vector<8x1xf32>
    %51 = arith.minimumf %49, %50 : vector<8x1xf32>
    %c0_26 = arith.constant 0 : index
    %c0_27 = arith.constant 0 : index
    %52 = vector.load %arg10[%c0_26, %c0_27] : memref<8x1xf32, #tpu.memory_space<vmem>>, vector<8x1xf32>
    tpu.vector_store %arg10[%c0_26, %c0_27], %51 {strides = array<i32>} : memref<8x1xf32, #tpu.memory_space<vmem>>, vector<8x1xf32>,
    return
  }
  func.func @transform_0(%arg0: i32) -> (i32, i32) {
    %c0_i32 = arith.constant 0 : i32
    %c0_i32_0 = arith.constant 0 : i32
    return %arg0, %c0_i32 : i32, i32
  }
  func.func @transform_1(%arg0: i32) -> (i32, i32) {
    %c0_i32 = arith.constant 0 : i32
    %c0_i32_0 = arith.constant 0 : i32
    %c0_i32_1 = arith.constant 0 : i32
    return %c0_i32, %c0_i32_0 : i32, i32
  }
  func.func @transform_2(%arg0: i32) -> (i32, i32) {
    %c0_i32 = arith.constant 0 : i32
    %c0_i32_0 = arith.constant 0 : i32
    %c0_i32_1 = arith.constant 0 : i32
    return %c0_i32, %c0_i32_0 : i32, i32
  }
  func.func @transform_3(%arg0: i32) -> (i32, i32) {
    %c0_i32 = arith.constant 0 : i32
    %c0_i32_0 = arith.constant 0 : i32
    %c0_i32_1 = arith.constant 0 : i32
    return %c0_i32, %c0_i32_0 : i32, i32
  }
  func.func @transform_4(%arg0: i32) -> (i32, i32) {
    %c0_i32 = arith.constant 0 : i32
    %c0_i32_0 = arith.constant 0 : i32
    %c0_i32_1 = arith.constant 0 : i32
    return %c0_i32, %c0_i32_0 : i32, i32
  }
  func.func @transform_5(%arg0: i32) -> (i32, i32) {
    %c0_i32 = arith.constant 0 : i32
    %c0_i32_0 = arith.constant 0 : i32
    %c0_i32_1 = arith.constant 0 : i32
    return %c0_i32, %c0_i32_0 : i32, i32
  }
  func.func @transform_6(%arg0: i32) -> (i32, i32) {
    %c0_i32 = arith.constant 0 : i32
    %c0_i32_0 = arith.constant 0 : i32
    %c0_i32_1 = arith.constant 0 : i32
    return %c0_i32, %c0_i32_0 : i32, i32
  }
  func.func @transform_7(%arg0: i32) -> (i32, i32) {
    %c0_i32 = arith.constant 0 : i32
    %c0_i32_0 = arith.constant 0 : i32
    %c0_i32_1 = arith.constant 0 : i32
    return %c0_i32, %c0_i32_0 : i32, i32
  }
  func.func @transform_8(%arg0: i32) -> (i32, i32) {
    %c0_i32 = arith.constant 0 : i32
    %c0_i32_0 = arith.constant 0 : i32
    %c0_i32_1 = arith.constant 0 : i32
    return %c0_i32, %c0_i32_0 : i32, i32
  }
  func.func @transform_9(%arg0: i32) -> (i32, i32) {
    %c0_i32 = arith.constant 0 : i32
    %c0_i32_0 = arith.constant 0 : i32
    return %arg0, %c0_i32 : i32, i32
  }
}

</mosaic_0001>

<llo_original>
// kernel: tpu_custom_call.1
$region0: #{tpu_custom_call.1}
  #allocation0 [shape = 'u32[]', space=smem, size = 0x4, offset = 0x4, fixed_abs, tag = 'smem constant byte address 0x4 - core index']
  #allocation1 [shape = 'u32[72,128]{1,0:T(1,128)}', space=vmem, size = 0x9000, scoped, tag = 'internal scratch']
  #allocation2 [shape = 'f32[1,1]{1,0:T(1,128)S(1)}', space=vmem, size = 0x200, scoped, tag = 'scoped memory for tpu_custom_call.1']
  %s0 = inlined_call_operand.hbm [shape: f32[8,64], index: 0, kind: input, shape index: {}]
  %s1 = inlined_call_operand.hbm [shape: f32[64,2048], index: 1, kind: input, shape index: {}]
  %s2 = inlined_call_operand.hbm [shape: f32[1,2048], index: 2, kind: input, shape index: {}]
  %s3 = inlined_call_operand.hbm [shape: f32[512,1024], index: 3, kind: input, shape index: {}]
  %s4 = inlined_call_operand.hbm [shape: f32[1,1024], index: 4, kind: input, shape index: {}]
  %s5 = inlined_call_operand.hbm [shape: f32[256,128], index: 5, kind: input, shape index: {}]
  %s6 = inlined_call_operand.hbm [shape: f32[1,128], index: 6, kind: input, shape index: {}]
  %s7 = inlined_call_operand.hbm [shape: f32[1,128], index: 7, kind: input, shape index: {}]
  %s8 = inlined_call_operand.<no memory space> [shape: f32[1,1], index: 8, kind: input, shape index: {}]
  %s9 = inlined_call_operand.vmem [shape: f32[8,1], index: 9, kind: output, shape index: {}]
  %s10 = sld [smem:[#allocation0]]
  $region78: #{tpu_custom_call.1} parent=0
    _
  %s12 = ssub.s32 1, %s10
  %s13 = scalar_select 0, %s12, %s10
  %v14 = vstv %s8
  %15 = vst [vmem:[#allocation2] sm:$0x1] %v14
  $region1: #{tpu_custom_call.1} parent=0
    #allocation3 [shape = 'u8[4096]{0}', space=vmem, size = 0x1000, scoped, tag = 'input window, operand 0, single buffered']
    #allocation4 [shape = 's32[1]{0}', space=sflag, size = 0x4, scoped, tag = 'scoped memory for tpu_custom_call.1']
    #allocation5 [shape = 'u8[524288]{0}', space=vmem, size = 0x80000, scoped, tag = 'input window, operand 1, single buffered']
    #allocation6 [shape = 's32[1]{0}', space=sflag, size = 0x4, scoped, tag = 'scoped memory for tpu_custom_call.1']
    #allocation7 [shape = 'u8[8192]{0}', space=vmem, size = 0x2000, scoped, tag = 'input window, operand 2, single buffered']
    #allocation8 [shape = 'u8[2097152]{0}', space=vmem, size = 0x200000, scoped, tag = 'input window, operand 3, single buffered']
    #allocation9 [shape = 's32[1]{0}', space=sflag, size = 0x4, scoped, tag = 'scoped memory for tpu_custom_call.1']
    #allocation10 [shape = 'u8[4096]{0}', space=vmem, size = 0x1000, scoped, tag = 'input window, operand 4, single buffered']
    #allocation11 [shape = 'u8[131072]{0}', space=vmem, size = 0x20000, scoped, tag = 'input window, operand 5, single buffered']
    #allocation12 [shape = 's32[1]{0}', space=sflag, size = 0x4, scoped, tag = 'scoped memory for tpu_custom_call.1']
    #allocation13 [shape = 'u8[512]{0}', space=vmem, size = 0x400, scoped, tag = 'input window, operand 6, single buffered']
    #allocation14 [shape = 'u8[512]{0}', space=vmem, size = 0x400, scoped, tag = 'input window, operand 7, single buffered']
    #allocation15 [shape = 's32[1]{0}', space=sflag, size = 0x4, scoped, tag = 'scoped memory for tpu_custom_call.1']
    %16 = vsyncpa [#allocation4], 0
    %17 = vsyncpa [#allocation6], 0
    %18 = vsyncpa [#allocation9], 0
    %19 = vsyncpa [#allocation12], 0
    %20 = vsyncpa [#allocation15], 0
    // Predicated region
    $region2: #{tpu_custom_call.1} parent=1 // pred_check
      _
    $region3: #{tpu_custom_call.1} parent=1 // pred_check_branch
      %22 = sbr.rel (0) target = $region5
    $region4: #{tpu_custom_call.1} parent=1 // pred_region
      %24 = vsyncadd [#allocation4], 0
      %s26 = sshll.u32 %s0, 4
      %s27 = int_to_ptr.hbm [resolvable:$true] %s26
      %s28 = sshll.u32 [#allocation3], 4
      %s29 = int_to_ptr.vmem [resolvable:$true] %s28
      %31 = dma.hbm_to_vmem [thread:$0]  %s27, 128, %s29, [#allocation4]
    $region5: #{tpu_custom_call.1} parent=1 // pred_fallthru
      _
    // Predicated region
    $region6: #{tpu_custom_call.1} parent=1 // pred_check
      _
    $region7: #{tpu_custom_call.1} parent=1 // pred_check_branch
      %33 = sbr.rel (0) target = $region9
    $region8: #{tpu_custom_call.1} parent=1 // pred_region
      %35 = vsyncadd [#allocation6], 0
      %s36 = sshll.u32 %s1, 4
      %s37 = int_to_ptr.hbm [resolvable:$true] %s36
      %s38 = sshll.u32 [#allocation5], 4
      %s39 = int_to_ptr.vmem [resolvable:$true] %s38
      %44 = dma.hbm_to_vmem [thread:$0]  %s37, 16384, %s39, [#allocation6], 2048, 2048, 128
    $region9: #{tpu_custom_call.1} parent=1 // pred_fallthru
      _
    // Predicated region
    $region10: #{tpu_custom_call.1} parent=1 // pred_check
      _
    $region11: #{tpu_custom_call.1} parent=1 // pred_check_branch
      %46 = sbr.rel (0) target = $region13
    $region12: #{tpu_custom_call.1} parent=1 // pred_region
      %48 = vsyncadd [#allocation6], 0
      %s50 = sshll.u32 %s2, 4
      %s51 = int_to_ptr.hbm [resolvable:$true] %s50
      %s52 = sshll.u32 [#allocation7], 4
      %s53 = int_to_ptr.vmem [resolvable:$true] %s52
      %55 = dma.hbm_to_vmem [thread:$0]  %s51, 256, %s53, [#allocation6]
    $region13: #{tpu_custom_call.1} parent=1 // pred_fallthru
      _
    // Predicated region
    $region14: #{tpu_custom_call.1} parent=1 // pred_check
      _
    $region15: #{tpu_custom_call.1} parent=1 // pred_check_branch
      %57 = sbr.rel (0) target = $region17
    $region16: #{tpu_custom_call.1} parent=1 // pred_region
      %59 = vsyncadd [#allocation9], 0
      %s60 = sshll.u32 %s3, 4
      %s61 = int_to_ptr.hbm [resolvable:$true] %s60
      %s62 = sshll.u32 [#allocation8], 4
      %s63 = int_to_ptr.vmem [resolvable:$true] %s62
      %68 = dma.hbm_to_vmem [thread:$0]  %s61, 65536, %s63, [#allocation9], 1024, 1024, 64
    $region17: #{tpu_custom_call.1} parent=1 // pred_fallthru
      _
    // Predicated region
    $region18: #{tpu_custom_call.1} parent=1 // pred_check
      _
    $region19: #{tpu_custom_call.1} parent=1 // pred_check_branch
      %70 = sbr.rel (0) target = $region21
    $region20: #{tpu_custom_call.1} parent=1 // pred_region
      %72 = vsyncadd [#allocation9], 0
      %s74 = sshll.u32 %s4, 4
      %s75 = int_to_ptr.hbm [resolvable:$true] %s74
      %s76 = sshll.u32 [#allocation10], 4
      %s77 = int_to_ptr.vmem [resolvable:$true] %s76
      %79 = dma.hbm_to_vmem [thread:$0]  %s75, 128, %s77, [#allocation9]
    $region21: #{tpu_custom_call.1} parent=1 // pred_fallthru
      _
    // Predicated region
    $region22: #{tpu_custom_call.1} parent=1 // pred_check
      _
    $region23: #{tpu_custom_call.1} parent=1 // pred_check_branch
      %81 = sbr.rel (0) target = $region25
    $region24: #{tpu_custom_call.1} parent=1 // pred_region
      %83 = vsyncadd [#allocation12], 0
      %s84 = sshll.u32 %s5, 4
      %s85 = int_to_ptr.hbm [resolvable:$true] %s84
      %s86 = sshll.u32 [#allocation11], 4
      %s87 = int_to_ptr.vmem [resolvable:$true] %s86
      %92 = dma.hbm_to_vmem [thread:$0]  %s85, 4096, %s87, [#allocation12], 128, 128, 8
    $region25: #{tpu_custom_call.1} parent=1 // pred_fallthru
      _
    // Predicated region
    $region26: #{tpu_custom_call.1} parent=1 // pred_check
      _
    $region27: #{tpu_custom_call.1} parent=1 // pred_check_branch
      %94 = sbr.rel (0) target = $region29
    $region28: #{tpu_custom_call.1} parent=1 // pred_region
      %96 = vsyncadd [#allocation12], 0
      %s98 = sshll.u32 %s6, 4
      %s99 = int_to_ptr.hbm [resolvable:$true] %s98
      %s100 = sshll.u32 [#allocation13], 4
      %s101 = int_to_ptr.vmem [resolvable:$true] %s100
      %103 = dma.hbm_to_vmem [thread:$0]  %s99, 16, %s101, [#allocation12]
    $region29: #{tpu_custom_call.1} parent=1 // pred_fallthru
      _
    // Predicated region
    $region30: #{tpu_custom_call.1} parent=1 // pred_check
      _
    $region31: #{tpu_custom_call.1} parent=1 // pred_check_branch
      %105 = sbr.rel (0) target = $region33
    $region32: #{tpu_custom_call.1} parent=1 // pred_region
      %107 = vsyncadd [#allocation15], 0
      %s109 = sshll.u32 %s7, 4
      %s110 = int_to_ptr.hbm [resolvable:$true] %s109
      %s111 = sshll.u32 [#allocation14], 4
      %s112 = int_to_ptr.vmem [resolvable:$true] %s111
      %114 = dma.hbm_to_vmem [thread:$0]  %s110, 16, %s112, [#allocation15]
    $region33: #{tpu_custom_call.1} parent=1 // pred_fallthru
      _
    // Predicated region
    $region34: #{tpu_custom_call.1} parent=1 // pred_check
      _
    $region35: #{tpu_custom_call.1} parent=1 // pred_check_branch
      %116 = sbr.rel (0) target = $region37
    $region36: #{tpu_custom_call.1} parent=1 // pred_region
      _
    $region37: #{tpu_custom_call.1} parent=1 // pred_fallthru
      _
    // Predicated region
    $region38: #{tpu_custom_call.1} parent=1 // pred_check
      _
    $region39: #{tpu_custom_call.1} parent=1 // pred_check_branch
      %118 = sbr.rel (0) target = $region41
    $region40: #{tpu_custom_call.1} parent=1 // pred_region
      %120 = dma.done [#allocation4], 128
    $region41: #{tpu_custom_call.1} parent=1 // pred_fallthru
      _
    // Predicated region
    $region42: #{tpu_custom_call.1} parent=1 // pred_check
      _
    $region43: #{tpu_custom_call.1} parent=1 // pred_check_branch
      %122 = sbr.rel (0) target = $region45
    $region44: #{tpu_custom_call.1} parent=1 // pred_region
      %124 = dma.done [#allocation6], 16384
    $region45: #{tpu_custom_call.1} parent=1 // pred_fallthru
      _
    // Predicated region
    $region46: #{tpu_custom_call.1} parent=1 // pred_check
      _
    $region47: #{tpu_custom_call.1} parent=1 // pred_check_branch
      %126 = sbr.rel (0) target = $region49
    $region48: #{tpu_custom_call.1} parent=1 // pred_region
      %128 = dma.done [#allocation6], 256
    $region49: #{tpu_custom_call.1} parent=1 // pred_fallthru
      _
    // Predicated region
    $region50: #{tpu_custom_call.1} parent=1 // pred_check
      _
    $region51: #{tpu_custom_call.1} parent=1 // pred_check_branch
      %130 = sbr.rel (0) target = $region53
    $region52: #{tpu_custom_call.1} parent=1 // pred_region
      %132 = dma.done [#allocation9], 65536
    $region53: #{tpu_custom_call.1} parent=1 // pred_fallthru
      _
    // Predicated region
    $region54: #{tpu_custom_call.1} parent=1 // pred_check
      _
    $region55: #{tpu_custom_call.1} parent=1 // pred_check_branch
      %134 = sbr.rel (0) target = $region57
    $region56: #{tpu_custom_call.1} parent=1 // pred_region
      %136 = dma.done [#allocation9], 128
    $region57: #{tpu_custom_call.1} parent=1 // pred_fallthru
      _
    // Predicated region
    $region58: #{tpu_custom_call.1} parent=1 // pred_check
      _
    $region59: #{tpu_custom_call.1} parent=1 // pred_check_branch
      %138 = sbr.rel (0) target = $region61
    $region60: #{tpu_custom_call.1} parent=1 // pred_region
      %140 = dma.done [#allocation12], 4096
    $region61: #{tpu_custom_call.1} parent=1 // pred_fallthru
      _
    // Predicated region
    $region62: #{tpu_custom_call.1} parent=1 // pred_check
      _
    $region63: #{tpu_custom_call.1} parent=1 // pred_check_branch
      %142 = sbr.rel (0) target = $region65
    $region64: #{tpu_custom_call.1} parent=1 // pred_region
      %144 = dma.done [#allocation12], 16
    $region65: #{tpu_custom_call.1} parent=1 // pred_fallthru
      _
    // Predicated region
    $region66: #{tpu_custom_call.1} parent=1 // pred_check
      _
    $region67: #{tpu_custom_call.1} parent=1 // pred_check_branch
      %146 = sbr.rel (0) target = $region69
    $region68: #{tpu_custom_call.1} parent=1 // pred_region
      %148 = dma.done [#allocation15], 16
    $region69: #{tpu_custom_call.1} parent=1 // pred_fallthru
      _
    %v149 = vld [vmem:[#allocation3] sm:$0xff]
    %v150 = vld [vmem:[#allocation5] sm:$0xff]
    %v151 = vld [vmem:[#allocation5 + $0x8] sm:$0xff]
    %v152 = vld [vmem:[#allocation5 + $0x10] sm:$0xff]
    %v153 = vld [vmem:[#allocation5 + $0x18] sm:$0xff]
    %v154 = vld [vmem:[#allocation5 + $0x20] sm:$0xff]
    %v155 = vld [vmem:[#allocation5 + $0x28] sm:$0xff]
    %v156 = vld [vmem:[#allocation5 + $0x30] sm:$0xff]
    %v157 = vld [vmem:[#allocation5 + $0x38] sm:$0xff]
    %v158 = vld [vmem:[#allocation5 + $0x40] sm:$0xff]
    %v159 = vld [vmem:[#allocation5 + $0x48] sm:$0xff]
    %v160 = vld [vmem:[#allocation5 + $0x50] sm:$0xff]
    %v161 = vld [vmem:[#allocation5 + $0x58] sm:$0xff]
    %v162 = vld [vmem:[#allocation5 + $0x60] sm:$0xff]
    %v163 = vld [vmem:[#allocation5 + $0x68] sm:$0xff]
    %v164 = vld [vmem:[#allocation5 + $0x70] sm:$0xff]
    %v165 = vld [vmem:[#allocation5 + $0x78] sm:$0xff]
    %v166 = vld [vmem:[#allocation5 + $0x80] sm:$0xff]
    %v167 = vld [vmem:[#allocation5 + $0x88] sm:$0xff]
    %v168 = vld [vmem:[#allocation5 + $0x90] sm:$0xff]
    %v169 = vld [vmem:[#allocation5 + $0x98] sm:$0xff]
    %v170 = vld [vmem:[#allocation5 + $0xa0] sm:$0xff]
    %v171 = vld [vmem:[#allocation5 + $0xa8] sm:$0xff]
    %v172 = vld [vmem:[#allocation5 + $0xb0] sm:$0xff]
    %v173 = vld [vmem:[#allocation5 + $0xb8] sm:$0xff]
    %v174 = vld [vmem:[#allocation5 + $0xc0] sm:$0xff]
    %v175 = vld [vmem:[#allocation5 + $0xc8] sm:$0xff]
    %v176 = vld [vmem:[#allocation5 + $0xd0] sm:$0xff]
    %v177 = vld [vmem:[#allocation5 + $0xd8] sm:$0xff]
    %v178 = vld [vmem:[#allocation5 + $0xe0] sm:$0xff]
    %v179 = vld [vmem:[#allocation5 + $0xe8] sm:$0xff]
    %v180 = vld [vmem:[#allocation5 + $0xf0] sm:$0xff]
    %v181 = vld [vmem:[#allocation5 + $0xf8] sm:$0xff]
    %v182 = vld [vmem:[#allocation5 + $0x100] sm:$0xff]
    %v183 = vld [vmem:[#allocation5 + $0x108] sm:$0xff]
    %v184 = vld [vmem:[#allocation5 + $0x110] sm:$0xff]
    %v185 = vld [vmem:[#allocation5 + $0x118] sm:$0xff]
    %v186 = vld [vmem:[#allocation5 + $0x120] sm:$0xff]
    %v187 = vld [vmem:[#allocation5 + $0x128] sm:$0xff]
    %v188 = vld [vmem:[#allocation5 + $0x130] sm:$0xff]
    %v189 = vld [vmem:[#allocation5 + $0x138] sm:$0xff]
    %v190 = vld [vmem:[#allocation5 + $0x140] sm:$0xff]
    %v191 = vld [vmem:[#allocation5 + $0x148] sm:$0xff]
    %v192 = vld [vmem:[#allocation5 + $0x150] sm:$0xff]
    %v193 = vld [vmem:[#allocation5 + $0x158] sm:$0xff]
    %v194 = vld [vmem:[#allocation5 + $0x160] sm:$0xff]
    %v195 = vld [vmem:[#allocation5 + $0x168] sm:$0xff]
    %v196 = vld [vmem:[#allocation5 + $0x170] sm:$0xff]
    %v197 = vld [vmem:[#allocation5 + $0x178] sm:$0xff]
    %v198 = vld [vmem:[#allocation5 + $0x180] sm:$0xff]
    %v199 = vld [vmem:[#allocation5 + $0x188] sm:$0xff]
    %v200 = vld [vmem:[#allocation5 + $0x190] sm:$0xff]
    %v201 = vld [vmem:[#allocation5 + $0x198] sm:$0xff]
    %v202 = vld [vmem:[#allocation5 + $0x1a0] sm:$0xff]
    %v203 = vld [vmem:[#allocation5 + $0x1a8] sm:$0xff]
    %v204 = vld [vmem:[#allocation5 + $0x1b0] sm:$0xff]
    %v205 = vld [vmem:[#allocation5 + $0x1b8] sm:$0xff]
    %v206 = vld [vmem:[#allocation5 + $0x1c0] sm:$0xff]
    %v207 = vld [vmem:[#allocation5 + $0x1c8] sm:$0xff]
    %v208 = vld [vmem:[#allocation5 + $0x1d0] sm:$0xff]
    %v209 = vld [vmem:[#allocation5 + $0x1d8] sm:$0xff]
    %v210 = vld [vmem:[#allocation5 + $0x1e0] sm:$0xff]
    %v211 = vld [vmem:[#allocation5 + $0x1e8] sm:$0xff]
    %v212 = vld [vmem:[#allocation5 + $0x1f0] sm:$0xff]
    %v213 = vld [vmem:[#allocation5 + $0x1f8] sm:$0xff]
    %v214 = vld [vmem:[#allocation5 + $0x200] sm:$0xff]
    %v215 = vld [vmem:[#allocation5 + $0x208] sm:$0xff]
    %v216 = vld [vmem:[#allocation5 + $0x210] sm:$0xff]
    %v217 = vld [vmem:[#allocation5 + $0x218] sm:$0xff]
    %v218 = vld [vmem:[#allocation5 + $0x220] sm:$0xff]
    %v219 = vld [vmem:[#allocation5 + $0x228] sm:$0xff]
    %v220 = vld [vmem:[#allocation5 + $0x230] sm:$0xff]
    %v221 = vld [vmem:[#allocation5 + $0x238] sm:$0xff]
    %v222 = vld [vmem:[#allocation5 + $0x240] sm:$0xff]
    %v223 = vld [vmem:[#allocation5 + $0x248] sm:$0xff]
    %v224 = vld [vmem:[#allocation5 + $0x250] sm:$0xff]
    %v225 = vld [vmem:[#allocation5 + $0x258] sm:$0xff]
    %v226 = vld [vmem:[#allocation5 + $0x260] sm:$0xff]
    %v227 = vld [vmem:[#allocation5 + $0x268] sm:$0xff]
    %v228 = vld [vmem:[#allocation5 + $0x270] sm:$0xff]
    %v229 = vld [vmem:[#allocation5 + $0x278] sm:$0xff]
    %v230 = vld [vmem:[#allocation5 + $0x280] sm:$0xff]
    %v231 = vld [vmem:[#allocation5 + $0x288] sm:$0xff]
    %v232 = vld [vmem:[#allocation5 + $0x290] sm:$0xff]
    %v233 = vld [vmem:[#allocation5 + $0x298] sm:$0xff]
    %v234 = vld [vmem:[#allocation5 + $0x2a0] sm:$0xff]
    %v235 = vld [vmem:[#allocation5 + $0x2a8] sm:$0xff]
    %v236 = vld [vmem:[#allocation5 + $0x2b0] sm:$0xff]
    %v237 = vld [vmem:[#allocation5 + $0x2b8] sm:$0xff]
    %v238 = vld [vmem:[#allocation5 + $0x2c0] sm:$0xff]
    %v239 = vld [vmem:[#allocation5 + $0x2c8] sm:$0xff]
    %v240 = vld [vmem:[#allocation5 + $0x2d0] sm:$0xff]
    %v241 = vld [vmem:[#allocation5 + $0x2d8] sm:$0xff]
    %v242 = vld [vmem:[#allocation5 + $0x2e0] sm:$0xff]
    %v243 = vld [vmem:[#allocation5 + $0x2e8] sm:$0xff]
    %v244 = vld [vmem:[#allocation5 + $0x2f0] sm:$0xff]
    %v245 = vld [vmem:[#allocation5 + $0x2f8] sm:$0xff]
    %v246 = vld [vmem:[#allocation5 + $0x300] sm:$0xff]
    %v247 = vld [vmem:[#allocation5 + $0x308] sm:$0xff]
    %v248 = vld [vmem:[#allocation5 + $0x310] sm:$0xff]
    %v249 = vld [vmem:[#allocation5 + $0x318] sm:$0xff]
    %v250 = vld [vmem:[#allocation5 + $0x320] sm:$0xff]
    %v251 = vld [vmem:[#allocation5 + $0x328] sm:$0xff]
    %v252 = vld [vmem:[#allocation5 + $0x330] sm:$0xff]
    %v253 = vld [vmem:[#allocation5 + $0x338] sm:$0xff]
    %v254 = vld [vmem:[#allocation5 + $0x340] sm:$0xff]
    %v255 = vld [vmem:[#allocation5 + $0x348] sm:$0xff]
    %v256 = vld [vmem:[#allocation5 + $0x350] sm:$0xff]
    %v257 = vld [vmem:[#allocation5 + $0x358] sm:$0xff]
    %v258 = vld [vmem:[#allocation5 + $0x360] sm:$0xff]
    %v259 = vld [vmem:[#allocation5 + $0x368] sm:$0xff]
    %v260 = vld [vmem:[#allocation5 + $0x370] sm:$0xff]
    %v261 = vld [vmem:[#allocation5 + $0x378] sm:$0xff]
    %v262 = vld [vmem:[#allocation5 + $0x380] sm:$0xff]
    %v263 = vld [vmem:[#allocation5 + $0x388] sm:$0xff]
    %v264 = vld [vmem:[#allocation5 + $0x390] sm:$0xff]
    %v265 = vld [vmem:[#allocation5 + $0x398] sm:$0xff]
    %v266 = vld [vmem:[#allocation5 + $0x3a0] sm:$0xff]
    %v267 = vld [vmem:[#allocation5 + $0x3a8] sm:$0xff]
    %v268 = vld [vmem:[#allocation5 + $0x3b0] sm:$0xff]
    %v269 = vld [vmem:[#allocation5 + $0x3b8] sm:$0xff]
    %v270 = vld [vmem:[#allocation5 + $0x3c0] sm:$0xff]
    %v271 = vld [vmem:[#allocation5 + $0x3c8] sm:$0xff]
    %v272 = vld [vmem:[#allocation5 + $0x3d0] sm:$0xff]
    %v273 = vld [vmem:[#allocation5 + $0x3d8] sm:$0xff]
    %v274 = vld [vmem:[#allocation5 + $0x3e0] sm:$0xff]
    %v275 = vld [vmem:[#allocation5 + $0x3e8] sm:$0xff]
    %v276 = vld [vmem:[#allocation5 + $0x3f0] sm:$0xff]
    %v277 = vld [vmem:[#allocation5 + $0x3f8] sm:$0xff]
    %v278 = vld [vmem:[#allocation7] sm:$0xff]
    %v279 = vld [vmem:[#allocation7 + $0x8] sm:$0xff]
    %v282 = vperm.slane %v278, 0
    %v283 = vperm.slane %v278, 1
    %v284 = vperm.slane %v278, 2
    %v285 = vperm.slane %v278, 3
    %v286 = vperm.slane %v278, 4
    %v287 = vperm.slane %v278, 5
    %v288 = vperm.slane %v278, 6
    %v289 = vperm.slane %v278, 7
    %v290 = vperm.slane %v279, 0
    %v291 = vperm.slane %v279, 1
    %v292 = vperm.slane %v279, 2
    %v293 = vperm.slane %v279, 3
    %v294 = vperm.slane %v279, 4
    %v295 = vperm.slane %v279, 5
    %v296 = vperm.slane %v279, 6
    %v297 = vperm.slane %v279, 7
    %vm314 = vcmask 523264
    %v316 = vsel %vm314, %v149, 0
    %318 = vmatpush.msra.mxu0 0.0
    %319 = vmatpush.msra.mxu0 0.0
    %320 = vmatpush.msra.mxu0 0.0
    %321 = vmatpush.msra.mxu0 0.0
    %322 = vmatpush.msra.mxu0 0.0
    %323 = vmatpush.msra.mxu0 0.0
    %324 = vmatpush.msra.mxu0 0.0
    %325 = vmatpush.msra.mxu0 0.0
    %326 = vmatpush.msra.mxu0 %v262
    %327 = vmatpush.msra.mxu0 %v246
    %328 = vmatpush.msra.mxu0 %v230
    %329 = vmatpush.msra.mxu0 %v214
    %330 = vmatpush.msra.mxu0 %v198
    %331 = vmatpush.msra.mxu0 %v182
    %332 = vmatpush.msra.mxu0 %v166
    %333 = vmatpush.msra.mxu0 %v150
    %334 = vmatmul.f32.gmra.mxu0 %v316
    %v335 = vpop.f32.mrf.mxu0
    %v336 = vadd.f32 %v282, %v335
    %337 = vdwg.mxu0
    %338 = vmatpush.msra.mxu0 0.0
    %339 = vmatpush.msra.mxu0 0.0
    %340 = vmatpush.msra.mxu0 0.0
    %341 = vmatpush.msra.mxu0 0.0
    %342 = vmatpush.msra.mxu0 0.0
    %343 = vmatpush.msra.mxu0 0.0
    %344 = vmatpush.msra.mxu0 0.0
    %345 = vmatpush.msra.mxu0 0.0
    %346 = vmatpush.msra.mxu0 %v263
    %347 = vmatpush.msra.mxu0 %v247
    %348 = vmatpush.msra.mxu0 %v231
    %349 = vmatpush.msra.mxu0 %v215
    %350 = vmatpush.msra.mxu0 %v199
    %351 = vmatpush.msra.mxu0 %v183
    %352 = vmatpush.msra.mxu0 %v167
    %353 = vmatpush.msra.mxu0 %v151
    %354 = vmatmul.f32.gmra.mxu0 %v316
    %v355 = vpop.f32.mrf.mxu0
    %v356 = vadd.f32 %v283, %v355
    %357 = vdwg.mxu0
    %358 = vmatpush.msra.mxu0 0.0
    %359 = vmatpush.msra.mxu0 0.0
    %360 = vmatpush.msra.mxu0 0.0
    %361 = vmatpush.msra.mxu0 0.0
    %362 = vmatpush.msra.mxu0 0.0
    %363 = vmatpush.msra.mxu0 0.0
    %364 = vmatpush.msra.mxu0 0.0
    %365 = vmatpush.msra.mxu0 0.0
    %366 = vmatpush.msra.mxu0 %v264
    %367 = vmatpush.msra.mxu0 %v248
    %368 = vmatpush.msra.mxu0 %v232
    %369 = vmatpush.msra.mxu0 %v216
    %370 = vmatpush.msra.mxu0 %v200
    %371 = vmatpush.msra.mxu0 %v184
    %372 = vmatpush.msra.mxu0 %v168
    %373 = vmatpush.msra.mxu0 %v152
    %374 = vmatmul.f32.gmra.mxu0 %v316
    %v375 = vpop.f32.mrf.mxu0
    %v376 = vadd.f32 %v284, %v375
    %377 = vdwg.mxu0
    %378 = vmatpush.msra.mxu0 0.0
    %379 = vmatpush.msra.mxu0 0.0
    %380 = vmatpush.msra.mxu0 0.0
    %381 = vmatpush.msra.mxu0 0.0
    %382 = vmatpush.msra.mxu0 0.0
    %383 = vmatpush.msra.mxu0 0.0
    %384 = vmatpush.msra.mxu0 0.0
    %385 = vmatpush.msra.mxu0 0.0
    %386 = vmatpush.msra.mxu0 %v265
    %387 = vmatpush.msra.mxu0 %v249
    %388 = vmatpush.msra.mxu0 %v233
    %389 = vmatpush.msra.mxu0 %v217
    %390 = vmatpush.msra.mxu0 %v201
    %391 = vmatpush.msra.mxu0 %v185
    %392 = vmatpush.msra.mxu0 %v169
    %393 = vmatpush.msra.mxu0 %v153
    %394 = vmatmul.f32.gmra.mxu0 %v316
    %v395 = vpop.f32.mrf.mxu0
    %v396 = vadd.f32 %v285, %v395
    %397 = vdwg.mxu0
    %398 = vmatpush.msra.mxu0 0.0
    %399 = vmatpush.msra.mxu0 0.0
    %400 = vmatpush.msra.mxu0 0.0
    %401 = vmatpush.msra.mxu0 0.0
    %402 = vmatpush.msra.mxu0 0.0
    %403 = vmatpush.msra.mxu0 0.0
    %404 = vmatpush.msra.mxu0 0.0
    %405 = vmatpush.msra.mxu0 0.0
    %406 = vmatpush.msra.mxu0 %v266
    %407 = vmatpush.msra.mxu0 %v250
    %408 = vmatpush.msra.mxu0 %v234
    %409 = vmatpush.msra.mxu0 %v218
    %410 = vmatpush.msra.mxu0 %v202
    %411 = vmatpush.msra.mxu0 %v186
    %412 = vmatpush.msra.mxu0 %v170
    %413 = vmatpush.msra.mxu0 %v154
    %414 = vmatmul.f32.gmra.mxu0 %v316
    %v415 = vpop.f32.mrf.mxu0
    %v416 = vadd.f32 %v286, %v415
    %417 = vdwg.mxu0
    %418 = vmatpush.msra.mxu0 0.0
    %419 = vmatpush.msra.mxu0 0.0
    %420 = vmatpush.msra.mxu0 0.0
    %421 = vmatpush.msra.mxu0 0.0
    %422 = vmatpush.msra.mxu0 0.0
    %423 = vmatpush.msra.mxu0 0.0
    %424 = vmatpush.msra.mxu0 0.0
    %425 = vmatpush.msra.mxu0 0.0
    %426 = vmatpush.msra.mxu0 %v267
    %427 = vmatpush.msra.mxu0 %v251
    %428 = vmatpush.msra.mxu0 %v235
    %429 = vmatpush.msra.mxu0 %v219
    %430 = vmatpush.msra.mxu0 %v203
    %431 = vmatpush.msra.mxu0 %v187
    %432 = vmatpush.msra.mxu0 %v171
    %433 = vmatpush.msra.mxu0 %v155
    %434 = vmatmul.f32.gmra.mxu0 %v316
    %v435 = vpop.f32.mrf.mxu0
    %v436 = vadd.f32 %v287, %v435
    %437 = vdwg.mxu0
    %438 = vmatpush.msra.mxu0 0.0
    %439 = vmatpush.msra.mxu0 0.0
    %440 = vmatpush.msra.mxu0 0.0
    %441 = vmatpush.msra.mxu0 0.0
    %442 = vmatpush.msra.mxu0 0.0
    %443 = vmatpush.msra.mxu0 0.0
    %444 = vmatpush.msra.mxu0 0.0
    %445 = vmatpush.msra.mxu0 0.0
    %446 = vmatpush.msra.mxu0 %v268
    %447 = vmatpush.msra.mxu0 %v252
    %448 = vmatpush.msra.mxu0 %v236
    %449 = vmatpush.msra.mxu0 %v220
    %450 = vmatpush.msra.mxu0 %v204
    %451 = vmatpush.msra.mxu0 %v188
    %452 = vmatpush.msra.mxu0 %v172
    %453 = vmatpush.msra.mxu0 %v156
    %454 = vmatmul.f32.gmra.mxu0 %v316
    %v455 = vpop.f32.mrf.mxu0
    %v456 = vadd.f32 %v288, %v455
    %457 = vdwg.mxu0
    %458 = vmatpush.msra.mxu0 0.0
    %459 = vmatpush.msra.mxu0 0.0
    %460 = vmatpush.msra.mxu0 0.0
    %461 = vmatpush.msra.mxu0 0.0
    %462 = vmatpush.msra.mxu0 0.0
    %463 = vmatpush.msra.mxu0 0.0
    %464 = vmatpush.msra.mxu0 0.0
    %465 = vmatpush.msra.mxu0 0.0
    %466 = vmatpush.msra.mxu0 %v269
    %467 = vmatpush.msra.mxu0 %v253
    %468 = vmatpush.msra.mxu0 %v237
    %469 = vmatpush.msra.mxu0 %v221
    %470 = vmatpush.msra.mxu0 %v205
    %471 = vmatpush.msra.mxu0 %v189
    %472 = vmatpush.msra.mxu0 %v173
    %473 = vmatpush.msra.mxu0 %v157
    %474 = vmatmul.f32.gmra.mxu0 %v316
    %v475 = vpop.f32.mrf.mxu0
    %v476 = vadd.f32 %v289, %v475
    %477 = vdwg.mxu0
    %478 = vmatpush.msra.mxu0 0.0
    %479 = vmatpush.msra.mxu0 0.0
    %480 = vmatpush.msra.mxu0 0.0
    %481 = vmatpush.msra.mxu0 0.0
    %482 = vmatpush.msra.mxu0 0.0
    %483 = vmatpush.msra.mxu0 0.0
    %484 = vmatpush.msra.mxu0 0.0
    %485 = vmatpush.msra.mxu0 0.0
    %486 = vmatpush.msra.mxu0 %v270
    %487 = vmatpush.msra.mxu0 %v254
    %488 = vmatpush.msra.mxu0 %v238
    %489 = vmatpush.msra.mxu0 %v222
    %490 = vmatpush.msra.mxu0 %v206
    %491 = vmatpush.msra.mxu0 %v190
    %492 = vmatpush.msra.mxu0 %v174
    %493 = vmatpush.msra.mxu0 %v158
    %494 = vmatmul.f32.gmra.mxu0 %v316
    %v495 = vpop.f32.mrf.mxu0
    %v496 = vadd.f32 %v290, %v495
    %497 = vdwg.mxu0
    %498 = vmatpush.msra.mxu0 0.0
    %499 = vmatpush.msra.mxu0 0.0
    %500 = vmatpush.msra.mxu0 0.0
    %501 = vmatpush.msra.mxu0 0.0
    %502 = vmatpush.msra.mxu0 0.0
    %503 = vmatpush.msra.mxu0 0.0
    %504 = vmatpush.msra.mxu0 0.0
    %505 = vmatpush.msra.mxu0 0.0
    %506 = vmatpush.msra.mxu0 %v271
    %507 = vmatpush.msra.mxu0 %v255
    %508 = vmatpush.msra.mxu0 %v239
    %509 = vmatpush.msra.mxu0 %v223
    %510 = vmatpush.msra.mxu0 %v207
    %511 = vmatpush.msra.mxu0 %v191
    %512 = vmatpush.msra.mxu0 %v175
    %513 = vmatpush.msra.mxu0 %v159
    %514 = vmatmul.f32.gmra.mxu0 %v316
    %v515 = vpop.f32.mrf.mxu0
    %v516 = vadd.f32 %v291, %v515
    %517 = vdwg.mxu0
    %518 = vmatpush.msra.mxu0 0.0
    %519 = vmatpush.msra.mxu0 0.0
    %520 = vmatpush.msra.mxu0 0.0
    %521 = vmatpush.msra.mxu0 0.0
    %522 = vmatpush.msra.mxu0 0.0
    %523 = vmatpush.msra.mxu0 0.0
    %524 = vmatpush.msra.mxu0 0.0
    %525 = vmatpush.msra.mxu0 0.0
    %526 = vmatpush.msra.mxu0 %v272
    %527 = vmatpush.msra.mxu0 %v256
    %528 = vmatpush.msra.mxu0 %v240
    %529 = vmatpush.msra.mxu0 %v224
    %530 = vmatpush.msra.mxu0 %v208
    %531 = vmatpush.msra.mxu0 %v192
    %532 = vmatpush.msra.mxu0 %v176
    %533 = vmatpush.msra.mxu0 %v160
    %534 = vmatmul.f32.gmra.mxu0 %v316
    %v535 = vpop.f32.mrf.mxu0
    %v536 = vadd.f32 %v292, %v535
    %537 = vdwg.mxu0
    %538 = vmatpush.msra.mxu0 0.0
    %539 = vmatpush.msra.mxu0 0.0
    %540 = vmatpush.msra.mxu0 0.0
    %541 = vmatpush.msra.mxu0 0.0
    %542 = vmatpush.msra.mxu0 0.0
    %543 = vmatpush.msra.mxu0 0.0
    %544 = vmatpush.msra.mxu0 0.0
    %545 = vmatpush.msra.mxu0 0.0
    %546 = vmatpush.msra.mxu0 %v273
    %547 = vmatpush.msra.mxu0 %v257
    %548 = vmatpush.msra.mxu0 %v241
    %549 = vmatpush.msra.mxu0 %v225
    %550 = vmatpush.msra.mxu0 %v209
    %551 = vmatpush.msra.mxu0 %v193
    %552 = vmatpush.msra.mxu0 %v177
    %553 = vmatpush.msra.mxu0 %v161
    %554 = vmatmul.f32.gmra.mxu0 %v316
    %v555 = vpop.f32.mrf.mxu0
    %v556 = vadd.f32 %v293, %v555
    %557 = vdwg.mxu0
    %558 = vmatpush.msra.mxu0 0.0
    %559 = vmatpush.msra.mxu0 0.0
    %560 = vmatpush.msra.mxu0 0.0
    %561 = vmatpush.msra.mxu0 0.0
    %562 = vmatpush.msra.mxu0 0.0
    %563 = vmatpush.msra.mxu0 0.0
    %564 = vmatpush.msra.mxu0 0.0
    %565 = vmatpush.msra.mxu0 0.0
    %566 = vmatpush.msra.mxu0 %v274
    %567 = vmatpush.msra.mxu0 %v258
    %568 = vmatpush.msra.mxu0 %v242
    %569 = vmatpush.msra.mxu0 %v226
    %570 = vmatpush.msra.mxu0 %v210
    %571 = vmatpush.msra.mxu0 %v194
    %572 = vmatpush.msra.mxu0 %v178
    %573 = vmatpush.msra.mxu0 %v162
    %574 = vmatmul.f32.gmra.mxu0 %v316
    %v575 = vpop.f32.mrf.mxu0
    %v576 = vadd.f32 %v294, %v575
    %577 = vdwg.mxu0
    %578 = vmatpush.msra.mxu0 0.0
    %579 = vmatpush.msra.mxu0 0.0
    %580 = vmatpush.msra.mxu0 0.0
    %581 = vmatpush.msra.mxu0 0.0
    %582 = vmatpush.msra.mxu0 0.0
    %583 = vmatpush.msra.mxu0 0.0
    %584 = vmatpush.msra.mxu0 0.0
    %585 = vmatpush.msra.mxu0 0.0
    %586 = vmatpush.msra.mxu0 %v275
    %587 = vmatpush.msra.mxu0 %v259
    %588 = vmatpush.msra.mxu0 %v243
    %589 = vmatpush.msra.mxu0 %v227
    %590 = vmatpush.msra.mxu0 %v211
    %591 = vmatpush.msra.mxu0 %v195
    %592 = vmatpush.msra.mxu0 %v179
    %593 = vmatpush.msra.mxu0 %v163
    %594 = vmatmul.f32.gmra.mxu0 %v316
    %v595 = vpop.f32.mrf.mxu0
    %v596 = vadd.f32 %v295, %v595
    %597 = vdwg.mxu0
    %598 = vmatpush.msra.mxu0 0.0
    %599 = vmatpush.msra.mxu0 0.0
    %600 = vmatpush.msra.mxu0 0.0
    %601 = vmatpush.msra.mxu0 0.0
    %602 = vmatpush.msra.mxu0 0.0
    %603 = vmatpush.msra.mxu0 0.0
    %604 = vmatpush.msra.mxu0 0.0
    %605 = vmatpush.msra.mxu0 0.0
    %606 = vmatpush.msra.mxu0 %v276
    %607 = vmatpush.msra.mxu0 %v260
    %608 = vmatpush.msra.mxu0 %v244
    %609 = vmatpush.msra.mxu0 %v228
    %610 = vmatpush.msra.mxu0 %v212
    %611 = vmatpush.msra.mxu0 %v196
    %612 = vmatpush.msra.mxu0 %v180
    %613 = vmatpush.msra.mxu0 %v164
    %614 = vmatmul.f32.gmra.mxu0 %v316
    %v615 = vpop.f32.mrf.mxu0
    %v616 = vadd.f32 %v296, %v615
    %617 = vdwg.mxu0
    %618 = vmatpush.msra.mxu0 0.0
    %619 = vmatpush.msra.mxu0 0.0
    %620 = vmatpush.msra.mxu0 0.0
    %621 = vmatpush.msra.mxu0 0.0
    %622 = vmatpush.msra.mxu0 0.0
    %623 = vmatpush.msra.mxu0 0.0
    %624 = vmatpush.msra.mxu0 0.0
    %625 = vmatpush.msra.mxu0 0.0
    %626 = vmatpush.msra.mxu0 %v277
    %627 = vmatpush.msra.mxu0 %v261
    %628 = vmatpush.msra.mxu0 %v245
    %629 = vmatpush.msra.mxu0 %v229
    %630 = vmatpush.msra.mxu0 %v213
    %631 = vmatpush.msra.mxu0 %v197
    %632 = vmatpush.msra.mxu0 %v181
    %633 = vmatpush.msra.mxu0 %v165
    %634 = vmatmul.f32.gmra.mxu0 %v316
    %v635 = vpop.f32.mrf.mxu0
    %v636 = vadd.f32 %v297, %v635
    %637 = vdwg.mxu0
    %v638 = vmax.f32 %v336, 0.0
    %v639 = vmax.f32 %v356, 0.0
    %v640 = vmax.f32 %v376, 0.0
    %v641 = vmax.f32 %v396, 0.0
    %v642 = vmax.f32 %v416, 0.0
    %v643 = vmax.f32 %v436, 0.0
    %v644 = vmax.f32 %v456, 0.0
    %v645 = vmax.f32 %v476, 0.0
    %v646 = vmax.f32 %v496, 0.0
    %v647 = vmax.f32 %v516, 0.0
    %v648 = vmax.f32 %v536, 0.0
    %v649 = vmax.f32 %v556, 0.0
    %v650 = vmax.f32 %v576, 0.0
    %v651 = vmax.f32 %v596, 0.0
    %v652 = vmax.f32 %v616, 0.0
    %v653 = vmax.f32 %v636, 0.0
    %v654 = vmax.f32 %v638, %v642
    %v655 = vmax.f32 %v639, %v643
    %v656 = vmax.f32 %v640, %v644
    %v657 = vmax.f32 %v641, %v645
    %v658 = vmax.f32 %v646, %v650
    %v659 = vmax.f32 %v647, %v651
    %v660 = vmax.f32 %v648, %v652
    %v661 = vmax.f32 %v649, %v653
    %v662 = vmax.f32 %v654, %v658
    %v663 = vmax.f32 %v655, %v659
    %v664 = vmax.f32 %v656, %v660
    %v665 = vmax.f32 %v657, %v661
    %v666 = vld [vmem:[#allocation8] sm:$0xff]
    %v667 = vld [vmem:[#allocation8 + $0x8] sm:$0xff]
    %v668 = vld [vmem:[#allocation8 + $0x10] sm:$0xff]
    %v669 = vld [vmem:[#allocation8 + $0x18] sm:$0xff]
    %v670 = vld [vmem:[#allocation8 + $0x20] sm:$0xff]
    %v671 = vld [vmem:[#allocation8 + $0x28] sm:$0xff]
    %v672 = vld [vmem:[#allocation8 + $0x30] sm:$0xff]
    %v673 = vld [vmem:[#allocation8 + $0x38] sm:$0xff]
    %v674 = vld [vmem:[#allocation8 + $0x40] sm:$0xff]
    %v675 = vld [vmem:[#allocation8 + $0x48] sm:$0xff]
    %v676 = vld [vmem:[#allocation8 + $0x50] sm:$0xff]
    %v677 = vld [vmem:[#allocation8 + $0x58] sm:$0xff]
    %v678 = vld [vmem:[#allocation8 + $0x60] sm:$0xff]
    %v679 = vld [vmem:[#allocation8 + $0x68] sm:$0xff]
    %v680 = vld [vmem:[#allocation8 + $0x70] sm:$0xff]
    %v681 = vld [vmem:[#allocation8 + $0x78] sm:$0xff]
    %v682 = vld [vmem:[#allocation8 + $0x80] sm:$0xff]
    %v683 = vld [vmem:[#allocation8 + $0x88] sm:$0xff]
    %v684 = vld [vmem:[#allocation8 + $0x90] sm:$0xff]
    %v685 = vld [vmem:[#allocation8 + $0x98] sm:$0xff]
    %v686 = vld [vmem:[#allocation8 + $0xa0] sm:$0xff]
    %v687 = vld [vmem:[#allocation8 + $0xa8] sm:$0xff]
    %v688 = vld [vmem:[#allocation8 + $0xb0] sm:$0xff]
    %v689 = vld [vmem:[#allocation8 + $0xb8] sm:$0xff]
    %v690 = vld [vmem:[#allocation8 + $0xc0] sm:$0xff]
    %v691 = vld [vmem:[#allocation8 + $0xc8] sm:$0xff]
    %v692 = vld [vmem:[#allocation8 + $0xd0] sm:$0xff]
    %v693 = vld [vmem:[#allocation8 + $0xd8] sm:$0xff]
    %v694 = vld [vmem:[#allocation8 + $0xe0] sm:$0xff]
    %v695 = vld [vmem:[#allocation8 + $0xe8] sm:$0xff]
    %v696 = vld [vmem:[#allocation8 + $0xf0] sm:$0xff]
    %v697 = vld [vmem:[#allocation8 + $0xf8] sm:$0xff]
    %v698 = vld [vmem:[#allocation8 + $0x100] sm:$0xff]
    %v699 = vld [vmem:[#allocation8 + $0x108] sm:$0xff]
    %v700 = vld [vmem:[#allocation8 + $0x110] sm:$0xff]
    %v701 = vld [vmem:[#allocation8 + $0x118] sm:$0xff]
    %v702 = vld [vmem:[#allocation8 + $0x120] sm:$0xff]
    %v703 = vld [vmem:[#allocation8 + $0x128] sm:$0xff]
    %v704 = vld [vmem:[#allocation8 + $0x130] sm:$0xff]
    %v705 = vld [vmem:[#allocation8 + $0x138] sm:$0xff]
    %v706 = vld [vmem:[#allocation8 + $0x140] sm:$0xff]
    %v707 = vld [vmem:[#allocation8 + $0x148] sm:$0xff]
    %v708 = vld [vmem:[#allocation8 + $0x150] sm:$0xff]
    %v709 = vld [vmem:[#allocation8 + $0x158] sm:$0xff]
    %v710 = vld [vmem:[#allocation8 + $0x160] sm:$0xff]
    %v711 = vld [vmem:[#allocation8 + $0x168] sm:$0xff]
    %v712 = vld [vmem:[#allocation8 + $0x170] sm:$0xff]
    %v713 = vld [vmem:[#allocation8 + $0x178] sm:$0xff]
    %v714 = vld [vmem:[#allocation8 + $0x180] sm:$0xff]
    %v715 = vld [vmem:[#allocation8 + $0x188] sm:$0xff]
    %v716 = vld [vmem:[#allocation8 + $0x190] sm:$0xff]
    %v717 = vld [vmem:[#allocation8 + $0x198] sm:$0xff]
    %v718 = vld [vmem:[#allocation8 + $0x1a0] sm:$0xff]
    %v719 = vld [vmem:[#allocation8 + $0x1a8] sm:$0xff]
    %v720 = vld [vmem:[#allocation8 + $0x1b0] sm:$0xff]
    %v721 = vld [vmem:[#allocation8 + $0x1b8] sm:$0xff]
    %v722 = vld [vmem:[#allocation8 + $0x1c0] sm:$0xff]
    %v723 = vld [vmem:[#allocation8 + $0x1c8] sm:$0xff]
    %v724 = vld [vmem:[#allocation8 + $0x1d0] sm:$0xff]
    %v725 = vld [vmem:[#allocation8 + $0x1d8] sm:$0xff]
    %v726 = vld [vmem:[#allocation8 + $0x1e0] sm:$0xff]
    %v727 = vld [vmem:[#allocation8 + $0x1e8] sm:$0xff]
    %v728 = vld [vmem:[#allocation8 + $0x1f0] sm:$0xff]
    %v729 = vld [vmem:[#allocation8 + $0x1f8] sm:$0xff]
    %v730 = vld [vmem:[#allocation8 + $0x200] sm:$0xff]
    %v731 = vld [vmem:[#allocation8 + $0x208] sm:$0xff]
    %v732 = vld [vmem:[#allocation8 + $0x210] sm:$0xff]
    %v733 = vld [vmem:[#allocation8 + $0x218] sm:$0xff]
    %v734 = vld [vmem:[#allocation8 + $0x220] sm:$0xff]
    %v735 = vld [vmem:[#allocation8 + $0x228] sm:$0xff]
    %v736 = vld [vmem:[#allocation8 + $0x230] sm:$0xff]
    %v737 = vld [vmem:[#allocation8 + $0x238] sm:$0xff]
    %v738 = vld [vmem:[#allocation8 + $0x240] sm:$0xff]
    %v739 = vld [vmem:[#allocation8 + $0x248] sm:$0xff]
    %v740 = vld [vmem:[#allocation8 + $0x250] sm:$0xff]
    %v741 = vld [vmem:[#allocation8 + $0x258] sm:$0xff]
    %v742 = vld [vmem:[#allocation8 + $0x260] sm:$0xff]
    %v743 = vld [vmem:[#allocation8 + $0x268] sm:$0xff]
    %v744 = vld [vmem:[#allocation8 + $0x270] sm:$0xff]
    %v745 = vld [vmem:[#allocation8 + $0x278] sm:$0xff]
    %v746 = vld [vmem:[#allocation8 + $0x280] sm:$0xff]
    %v747 = vld [vmem:[#allocation8 + $0x288] sm:$0xff]
    %v748 = vld [vmem:[#allocation8 + $0x290] sm:$0xff]
    %v749 = vld [vmem:[#allocation8 + $0x298] sm:$0xff]
    %v750 = vld [vmem:[#allocation8 + $0x2a0] sm:$0xff]
    %v751 = vld [vmem:[#allocation8 + $0x2a8] sm:$0xff]
    %v752 = vld [vmem:[#allocation8 + $0x2b0] sm:$0xff]
    %v753 = vld [vmem:[#allocation8 + $0x2b8] sm:$0xff]
    %v754 = vld [vmem:[#allocation8 + $0x2c0] sm:$0xff]
    %v755 = vld [vmem:[#allocation8 + $0x2c8] sm:$0xff]
    %v756 = vld [vmem:[#allocation8 + $0x2d0] sm:$0xff]
    %v757 = vld [vmem:[#allocation8 + $0x2d8] sm:$0xff]
    %v758 = vld [vmem:[#allocation8 + $0x2e0] sm:$0xff]
    %v759 = vld [vmem:[#allocation8 + $0x2e8] sm:$0xff]
    %v760 = vld [vmem:[#allocation8 + $0x2f0] sm:$0xff]
    %v761 = vld [vmem:[#allocation8 + $0x2f8] sm:$0xff]
    %v762 = vld [vmem:[#allocation8 + $0x300] sm:$0xff]
    %v763 = vld [vmem:[#allocation8 + $0x308] sm:$0xff]
    %v764 = vld [vmem:[#allocation8 + $0x310] sm:$0xff]
    %v765 = vld [vmem:[#allocation8 + $0x318] sm:$0xff]
    %v766 = vld [vmem:[#allocation8 + $0x320] sm:$0xff]
    %v767 = vld [vmem:[#allocation8 + $0x328] sm:$0xff]
    %v768 = vld [vmem:[#allocation8 + $0x330] sm:$0xff]
    %v769 = vld [vmem:[#allocation8 + $0x338] sm:$0xff]
    %v770 = vld [vmem:[#allocation8 + $0x340] sm:$0xff]
    %v771 = vld [vmem:[#allocation8 + $0x348] sm:$0xff]
    %v772 = vld [vmem:[#allocation8 + $0x350] sm:$0xff]
    %v773 = vld [vmem:[#allocation8 + $0x358] sm:$0xff]
    %v774 = vld [vmem:[#allocation8 + $0x360] sm:$0xff]
    %v775 = vld [vmem:[#allocation8 + $0x368] sm:$0xff]
    %v776 = vld [vmem:[#allocation8 + $0x370] sm:$0xff]
    %v777 = vld [vmem:[#allocation8 + $0x378] sm:$0xff]
    %v778 = vld [vmem:[#allocation8 + $0x380] sm:$0xff]
    %v779 = vld [vmem:[#allocation8 + $0x388] sm:$0xff]
    %v780 = vld [vmem:[#allocation8 + $0x390] sm:$0xff]
    %v781 = vld [vmem:[#allocation8 + $0x398] sm:$0xff]
    %v782 = vld [vmem:[#allocation8 + $0x3a0] sm:$0xff]
    %v783 = vld [vmem:[#allocation8 + $0x3a8] sm:$0xff]
    %v784 = vld [vmem:[#allocation8 + $0x3b0] sm:$0xff]
    %v785 = vld [vmem:[#allocation8 + $0x3b8] sm:$0xff]
    %v786 = vld [vmem:[#allocation8 + $0x3c0] sm:$0xff]
    %v787 = vld [vmem:[#allocation8 + $0x3c8] sm:$0xff]
    %v788 = vld [vmem:[#allocation8 + $0x3d0] sm:$0xff]
    %v789 = vld [vmem:[#allocation8 + $0x3d8] sm:$0xff]
    %v790 = vld [vmem:[#allocation8 + $0x3e0] sm:$0xff]
    %v791 = vld [vmem:[#allocation8 + $0x3e8] sm:$0xff]
    %v792 = vld [vmem:[#allocation8 + $0x3f0] sm:$0xff]
    %v793 = vld [vmem:[#allocation8 + $0x3f8] sm:$0xff]
    %v794 = vld [vmem:[#allocation8 + $0x400] sm:$0xff]
    %v795 = vld [vmem:[#allocation8 + $0x408] sm:$0xff]
    %v796 = vld [vmem:[#allocation8 + $0x410] sm:$0xff]
    %v797 = vld [vmem:[#allocation8 + $0x418] sm:$0xff]
    %v798 = vld [vmem:[#allocation8 + $0x420] sm:$0xff]
    %v799 = vld [vmem:[#allocation8 + $0x428] sm:$0xff]
    %v800 = vld [vmem:[#allocation8 + $0x430] sm:$0xff]
    %v801 = vld [vmem:[#allocation8 + $0x438] sm:$0xff]
    %v802 = vld [vmem:[#allocation8 + $0x440] sm:$0xff]
    %v803 = vld [vmem:[#allocation8 + $0x448] sm:$0xff]
    %v804 = vld [vmem:[#allocation8 + $0x450] sm:$0xff]
    %v805 = vld [vmem:[#allocation8 + $0x458] sm:$0xff]
    %v806 = vld [vmem:[#allocation8 + $0x460] sm:$0xff]
    %v807 = vld [vmem:[#allocation8 + $0x468] sm:$0xff]
    %v808 = vld [vmem:[#allocation8 + $0x470] sm:$0xff]
    %v809 = vld [vmem:[#allocation8 + $0x478] sm:$0xff]
    %v810 = vld [vmem:[#allocation8 + $0x480] sm:$0xff]
    %v811 = vld [vmem:[#allocation8 + $0x488] sm:$0xff]
    %v812 = vld [vmem:[#allocation8 + $0x490] sm:$0xff]
    %v813 = vld [vmem:[#allocation8 + $0x498] sm:$0xff]
    %v814 = vld [vmem:[#allocation8 + $0x4a0] sm:$0xff]
    %v815 = vld [vmem:[#allocation8 + $0x4a8] sm:$0xff]
    %v816 = vld [vmem:[#allocation8 + $0x4b0] sm:$0xff]
    %v817 = vld [vmem:[#allocation8 + $0x4b8] sm:$0xff]
    %v818 = vld [vmem:[#allocation8 + $0x4c0] sm:$0xff]
    %v819 = vld [vmem:[#allocation8 + $0x4c8] sm:$0xff]
    %v820 = vld [vmem:[#allocation8 + $0x4d0] sm:$0xff]
    %v821 = vld [vmem:[#allocation8 + $0x4d8] sm:$0xff]
    %v822 = vld [vmem:[#allocation8 + $0x4e0] sm:$0xff]
    %v823 = vld [vmem:[#allocation8 + $0x4e8] sm:$0xff]
    %v824 = vld [vmem:[#allocation8 + $0x4f0] sm:$0xff]
    %v825 = vld [vmem:[#allocation8 + $0x4f8] sm:$0xff]
    %v826 = vld [vmem:[#allocation8 + $0x500] sm:$0xff]
    %v827 = vld [vmem:[#allocation8 + $0x508] sm:$0xff]
    %v828 = vld [vmem:[#allocation8 + $0x510] sm:$0xff]
    %v829 = vld [vmem:[#allocation8 + $0x518] sm:$0xff]
    %v830 = vld [vmem:[#allocation8 + $0x520] sm:$0xff]
    %v831 = vld [vmem:[#allocation8 + $0x528] sm:$0xff]
    %v832 = vld [vmem:[#allocation8 + $0x530] sm:$0xff]
    %v833 = vld [vmem:[#allocation8 + $0x538] sm:$0xff]
    %v834 = vld [vmem:[#allocation8 + $0x540] sm:$0xff]
    %v835 = vld [vmem:[#allocation8 + $0x548] sm:$0xff]
    %v836 = vld [vmem:[#allocation8 + $0x550] sm:$0xff]
    %v837 = vld [vmem:[#allocation8 + $0x558] sm:$0xff]
    %v838 = vld [vmem:[#allocation8 + $0x560] sm:$0xff]
    %v839 = vld [vmem:[#allocation8 + $0x568] sm:$0xff]
    %v840 = vld [vmem:[#allocation8 + $0x570] sm:$0xff]
    %v841 = vld [vmem:[#allocation8 + $0x578] sm:$0xff]
    %v842 = vld [vmem:[#allocation8 + $0x580] sm:$0xff]
    %v843 = vld [vmem:[#allocation8 + $0x588] sm:$0xff]
    %v844 = vld [vmem:[#allocation8 + $0x590] sm:$0xff]
    %v845 = vld [vmem:[#allocation8 + $0x598] sm:$0xff]
    %v846 = vld [vmem:[#allocation8 + $0x5a0] sm:$0xff]
    %v847 = vld [vmem:[#allocation8 + $0x5a8] sm:$0xff]
    %v848 = vld [vmem:[#allocation8 + $0x5b0] sm:$0xff]
    %v849 = vld [vmem:[#allocation8 + $0x5b8] sm:$0xff]
    %v850 = vld [vmem:[#allocation8 + $0x5c0] sm:$0xff]
    %v851 = vld [vmem:[#allocation8 + $0x5c8] sm:$0xff]
    %v852 = vld [vmem:[#allocation8 + $0x5d0] sm:$0xff]
    %v853 = vld [vmem:[#allocation8 + $0x5d8] sm:$0xff]
    %v854 = vld [vmem:[#allocation8 + $0x5e0] sm:$0xff]
    %v855 = vld [vmem:[#allocation8 + $0x5e8] sm:$0xff]
    %v856 = vld [vmem:[#allocation8 + $0x5f0] sm:$0xff]
    %v857 = vld [vmem:[#allocation8 + $0x5f8] sm:$0xff]
    %v858 = vld [vmem:[#allocation8 + $0x600] sm:$0xff]
    %v859 = vld [vmem:[#allocation8 + $0x608] sm:$0xff]
    %v860 = vld [vmem:[#allocation8 + $0x610] sm:$0xff]
    %v861 = vld [vmem:[#allocation8 + $0x618] sm:$0xff]
    %v862 = vld [vmem:[#allocation8 + $0x620] sm:$0xff]
    %v863 = vld [vmem:[#allocation8 + $0x628] sm:$0xff]
    %v864 = vld [vmem:[#allocation8 + $0x630] sm:$0xff]
    %v865 = vld [vmem:[#allocation8 + $0x638] sm:$0xff]
    %v866 = vld [vmem:[#allocation8 + $0x640] sm:$0xff]
    %v867 = vld [vmem:[#allocation8 + $0x648] sm:$0xff]
    %v868 = vld [vmem:[#allocation8 + $0x650] sm:$0xff]
    %v869 = vld [vmem:[#allocation8 + $0x658] sm:$0xff]
    %v870 = vld [vmem:[#allocation8 + $0x660] sm:$0xff]
    %v871 = vld [vmem:[#allocation8 + $0x668] sm:$0xff]
    %v872 = vld [vmem:[#allocation8 + $0x670] sm:$0xff]
    %v873 = vld [vmem:[#allocation8 + $0x678] sm:$0xff]
    %v874 = vld [vmem:[#allocation8 + $0x680] sm:$0xff]
    %v875 = vld [vmem:[#allocation8 + $0x688] sm:$0xff]
    %v876 = vld [vmem:[#allocation8 + $0x690] sm:$0xff]
    %v877 = vld [vmem:[#allocation8 + $0x698] sm:$0xff]
    %v878 = vld [vmem:[#allocation8 + $0x6a0] sm:$0xff]
    %v879 = vld [vmem:[#allocation8 + $0x6a8] sm:$0xff]
    %v880 = vld [vmem:[#allocation8 + $0x6b0] sm:$0xff]
    %v881 = vld [vmem:[#allocation8 + $0x6b8] sm:$0xff]
    %v882 = vld [vmem:[#allocation8 + $0x6c0] sm:$0xff]
    %v883 = vld [vmem:[#allocation8 + $0x6c8] sm:$0xff]
    %v884 = vld [vmem:[#allocation8 + $0x6d0] sm:$0xff]
    %v885 = vld [vmem:[#allocation8 + $0x6d8] sm:$0xff]
    %v886 = vld [vmem:[#allocation8 + $0x6e0] sm:$0xff]
    %v887 = vld [vmem:[#allocation8 + $0x6e8] sm:$0xff]
    %v888 = vld [vmem:[#allocation8 + $0x6f0] sm:$0xff]
    %v889 = vld [vmem:[#allocation8 + $0x6f8] sm:$0xff]
    %v890 = vld [vmem:[#allocation8 + $0x700] sm:$0xff]
    %v891 = vld [vmem:[#allocation8 + $0x708] sm:$0xff]
    %v892 = vld [vmem:[#allocation8 + $0x710] sm:$0xff]
    %v893 = vld [vmem:[#allocation8 + $0x718] sm:$0xff]
    %v894 = vld [vmem:[#allocation8 + $0x720] sm:$0xff]
    %v895 = vld [vmem:[#allocation8 + $0x728] sm:$0xff]
    %v896 = vld [vmem:[#allocation8 + $0x730] sm:$0xff]
    %v897 = vld [vmem:[#allocation8 + $0x738] sm:$0xff]
    %v898 = vld [vmem:[#allocation8 + $0x740] sm:$0xff]
    %v899 = vld [vmem:[#allocation8 + $0x748] sm:$0xff]
    %v900 = vld [vmem:[#allocation8 + $0x750] sm:$0xff]
    %v901 = vld [vmem:[#allocation8 + $0x758] sm:$0xff]
    %v902 = vld [vmem:[#allocation8 + $0x760] sm:$0xff]
    %v903 = vld [vmem:[#allocation8 + $0x768] sm:$0xff]
    %v904 = vld [vmem:[#allocation8 + $0x770] sm:$0xff]
    %v905 = vld [vmem:[#allocation8 + $0x778] sm:$0xff]
    %v906 = vld [vmem:[#allocation8 + $0x780] sm:$0xff]
    %v907 = vld [vmem:[#allocation8 + $0x788] sm:$0xff]
    %v908 = vld [vmem:[#allocation8 + $0x790] sm:$0xff]
    %v909 = vld [vmem:[#allocation8 + $0x798] sm:$0xff]
    %v910 = vld [vmem:[#allocation8 + $0x7a0] sm:$0xff]
    %v911 = vld [vmem:[#allocation8 + $0x7a8] sm:$0xff]
    %v912 = vld [vmem:[#allocation8 + $0x7b0] sm:$0xff]
    %v913 = vld [vmem:[#allocation8 + $0x7b8] sm:$0xff]
    %v914 = vld [vmem:[#allocation8 + $0x7c0] sm:$0xff]
    %v915 = vld [vmem:[#allocation8 + $0x7c8] sm:$0xff]
    %v916 = vld [vmem:[#allocation8 + $0x7d0] sm:$0xff]
    %v917 = vld [vmem:[#allocation8 + $0x7d8] sm:$0xff]
    %v918 = vld [vmem:[#allocation8 + $0x7e0] sm:$0xff]
    %v919 = vld [vmem:[#allocation8 + $0x7e8] sm:$0xff]
    %v920 = vld [vmem:[#allocation8 + $0x7f0] sm:$0xff]
    %v921 = vld [vmem:[#allocation8 + $0x7f8] sm:$0xff]
    %v922 = vld [vmem:[#allocation8 + $0x800] sm:$0xff]
    %v923 = vld [vmem:[#allocation8 + $0x808] sm:$0xff]
    %v924 = vld [vmem:[#allocation8 + $0x810] sm:$0xff]
    %v925 = vld [vmem:[#allocation8 + $0x818] sm:$0xff]
    %v926 = vld [vmem:[#allocation8 + $0x820] sm:$0xff]
    %v927 = vld [vmem:[#allocation8 + $0x828] sm:$0xff]
    %v928 = vld [vmem:[#allocation8 + $0x830] sm:$0xff]
    %v929 = vld [vmem:[#allocation8 + $0x838] sm:$0xff]
    %v930 = vld [vmem:[#allocation8 + $0x840] sm:$0xff]
    %v931 = vld [vmem:[#allocation8 + $0x848] sm:$0xff]
    %v932 = vld [vmem:[#allocation8 + $0x850] sm:$0xff]
    %v933 = vld [vmem:[#allocation8 + $0x858] sm:$0xff]
    %v934 = vld [vmem:[#allocation8 + $0x860] sm:$0xff]
    %v935 = vld [vmem:[#allocation8 + $0x868] sm:$0xff]
    %v936 = vld [vmem:[#allocation8 + $0x870] sm:$0xff]
    %v937 = vld [vmem:[#allocation8 + $0x878] sm:$0xff]
    %v938 = vld [vmem:[#allocation8 + $0x880] sm:$0xff]
    %v939 = vld [vmem:[#allocation8 + $0x888] sm:$0xff]
    %v940 = vld [vmem:[#allocation8 + $0x890] sm:$0xff]
    %v941 = vld [vmem:[#allocation8 + $0x898] sm:$0xff]
    %v942 = vld [vmem:[#allocation8 + $0x8a0] sm:$0xff]
    %v943 = vld [vmem:[#allocation8 + $0x8a8] sm:$0xff]
    %v944 = vld [vmem:[#allocation8 + $0x8b0] sm:$0xff]
    %v945 = vld [vmem:[#allocation8 + $0x8b8] sm:$0xff]
    %v946 = vld [vmem:[#allocation8 + $0x8c0] sm:$0xff]
    %v947 = vld [vmem:[#allocation8 + $0x8c8] sm:$0xff]
    %v948 = vld [vmem:[#allocation8 + $0x8d0] sm:$0xff]
    %v949 = vld [vmem:[#allocation8 + $0x8d8] sm:$0xff]
    %v950 = vld [vmem:[#allocation8 + $0x8e0] sm:$0xff]
    %v951 = vld [vmem:[#allocation8 + $0x8e8] sm:$0xff]
    %v952 = vld [vmem:[#allocation8 + $0x8f0] sm:$0xff]
    %v953 = vld [vmem:[#allocation8 + $0x8f8] sm:$0xff]
    %v954 = vld [vmem:[#allocation8 + $0x900] sm:$0xff]
    %v955 = vld [vmem:[#allocation8 + $0x908] sm:$0xff]
    %v956 = vld [vmem:[#allocation8 + $0x910] sm:$0xff]
    %v957 = vld [vmem:[#allocation8 + $0x918] sm:$0xff]
    %v958 = vld [vmem:[#allocation8 + $0x920] sm:$0xff]
    %v959 = vld [vmem:[#allocation8 + $0x928] sm:$0xff]
    %v960 = vld [vmem:[#allocation8 + $0x930] sm:$0xff]
    %v961 = vld [vmem:[#allocation8 + $0x938] sm:$0xff]
    %v962 = vld [vmem:[#allocation8 + $0x940] sm:$0xff]
    %v963 = vld [vmem:[#allocation8 + $0x948] sm:$0xff]
    %v964 = vld [vmem:[#allocation8 + $0x950] sm:$0xff]
    %v965 = vld [vmem:[#allocation8 + $0x958] sm:$0xff]
    %v966 = vld [vmem:[#allocation8 + $0x960] sm:$0xff]
    %v967 = vld [vmem:[#allocation8 + $0x968] sm:$0xff]
    %v968 = vld [vmem:[#allocation8 + $0x970] sm:$0xff]
    %v969 = vld [vmem:[#allocation8 + $0x978] sm:$0xff]
    %v970 = vld [vmem:[#allocation8 + $0x980] sm:$0xff]
    %v971 = vld [vmem:[#allocation8 + $0x988] sm:$0xff]
    %v972 = vld [vmem:[#allocation8 + $0x990] sm:$0xff]
    %v973 = vld [vmem:[#allocation8 + $0x998] sm:$0xff]
    %v974 = vld [vmem:[#allocation8 + $0x9a0] sm:$0xff]
    %v975 = vld [vmem:[#allocation8 + $0x9a8] sm:$0xff]
    %v976 = vld [vmem:[#allocation8 + $0x9b0] sm:$0xff]
    %v977 = vld [vmem:[#allocation8 + $0x9b8] sm:$0xff]
    %v978 = vld [vmem:[#allocation8 + $0x9c0] sm:$0xff]
    %v979 = vld [vmem:[#allocation8 + $0x9c8] sm:$0xff]
    %v980 = vld [vmem:[#allocation8 + $0x9d0] sm:$0xff]
    %v981 = vld [vmem:[#allocation8 + $0x9d8] sm:$0xff]
    %v982 = vld [vmem:[#allocation8 + $0x9e0] sm:$0xff]
    %v983 = vld [vmem:[#allocation8 + $0x9e8] sm:$0xff]
    %v984 = vld [vmem:[#allocation8 + $0x9f0] sm:$0xff]
    %v985 = vld [vmem:[#allocation8 + $0x9f8] sm:$0xff]
    %v986 = vld [vmem:[#allocation8 + $0xa00] sm:$0xff]
    %v987 = vld [vmem:[#allocation8 + $0xa08] sm:$0xff]
    %v988 = vld [vmem:[#allocation8 + $0xa10] sm:$0xff]
    %v989 = vld [vmem:[#allocation8 + $0xa18] sm:$0xff]
    %v990 = vld [vmem:[#allocation8 + $0xa20] sm:$0xff]
    %v991 = vld [vmem:[#allocation8 + $0xa28] sm:$0xff]
    %v992 = vld [vmem:[#allocation8 + $0xa30] sm:$0xff]
    %v993 = vld [vmem:[#allocation8 + $0xa38] sm:$0xff]
    %v994 = vld [vmem:[#allocation8 + $0xa40] sm:$0xff]
    %v995 = vld [vmem:[#allocation8 + $0xa48] sm:$0xff]
    %v996 = vld [vmem:[#allocation8 + $0xa50] sm:$0xff]
    %v997 = vld [vmem:[#allocation8 + $0xa58] sm:$0xff]
    %v998 = vld [vmem:[#allocation8 + $0xa60] sm:$0xff]
    %v999 = vld [vmem:[#allocation8 + $0xa68] sm:$0xff]
    %v1000 = vld [vmem:[#allocation8 + $0xa70] sm:$0xff]
    %v1001 = vld [vmem:[#allocation8 + $0xa78] sm:$0xff]
    %v1002 = vld [vmem:[#allocation8 + $0xa80] sm:$0xff]
    %v1003 = vld [vmem:[#allocation8 + $0xa88] sm:$0xff]
    %v1004 = vld [vmem:[#allocation8 + $0xa90] sm:$0xff]
    %v1005 = vld [vmem:[#allocation8 + $0xa98] sm:$0xff]
    %v1006 = vld [vmem:[#allocation8 + $0xaa0] sm:$0xff]
    %v1007 = vld [vmem:[#allocation8 + $0xaa8] sm:$0xff]
    %v1008 = vld [vmem:[#allocation8 + $0xab0] sm:$0xff]
    %v1009 = vld [vmem:[#allocation8 + $0xab8] sm:$0xff]
    %v1010 = vld [vmem:[#allocation8 + $0xac0] sm:$0xff]
    %v1011 = vld [vmem:[#allocation8 + $0xac8] sm:$0xff]
    %v1012 = vld [vmem:[#allocation8 + $0xad0] sm:$0xff]
    %v1013 = vld [vmem:[#allocation8 + $0xad8] sm:$0xff]
    %v1014 = vld [vmem:[#allocation8 + $0xae0] sm:$0xff]
    %v1015 = vld [vmem:[#allocation8 + $0xae8] sm:$0xff]
    %v1016 = vld [vmem:[#allocation8 + $0xaf0] sm:$0xff]
    %v1017 = vld [vmem:[#allocation8 + $0xaf8] sm:$0xff]
    %v1018 = vld [vmem:[#allocation8 + $0xb00] sm:$0xff]
    %v1019 = vld [vmem:[#allocation8 + $0xb08] sm:$0xff]
    %v1020 = vld [vmem:[#allocation8 + $0xb10] sm:$0xff]
    %v1021 = vld [vmem:[#allocation8 + $0xb18] sm:$0xff]
    %v1022 = vld [vmem:[#allocation8 + $0xb20] sm:$0xff]
    %v1023 = vld [vmem:[#allocation8 + $0xb28] sm:$0xff]
    %v1024 = vld [vmem:[#allocation8 + $0xb30] sm:$0xff]
    %v1025 = vld [vmem:[#allocation8 + $0xb38] sm:$0xff]
    %v1026 = vld [vmem:[#allocation8 + $0xb40] sm:$0xff]
    %v1027 = vld [vmem:[#allocation8 + $0xb48] sm:$0xff]
    %v1028 = vld [vmem:[#allocation8 + $0xb50] sm:$0xff]
    %v1029 = vld [vmem:[#allocation8 + $0xb58] sm:$0xff]
    %v1030 = vld [vmem:[#allocation8 + $0xb60] sm:$0xff]
    %v1031 = vld [vmem:[#allocation8 + $0xb68] sm:$0xff]
    %v1032 = vld [vmem:[#allocation8 + $0xb70] sm:$0xff]
    %v1033 = vld [vmem:[#allocation8 + $0xb78] sm:$0xff]
    %v1034 = vld [vmem:[#allocation8 + $0xb80] sm:$0xff]
    %v1035 = vld [vmem:[#allocation8 + $0xb88] sm:$0xff]
    %v1036 = vld [vmem:[#allocation8 + $0xb90] sm:$0xff]
    %v1037 = vld [vmem:[#allocation8 + $0xb98] sm:$0xff]
    %v1038 = vld [vmem:[#allocation8 + $0xba0] sm:$0xff]
    %v1039 = vld [vmem:[#allocation8 + $0xba8] sm:$0xff]
    %v1040 = vld [vmem:[#allocation8 + $0xbb0] sm:$0xff]
    %v1041 = vld [vmem:[#allocation8 + $0xbb8] sm:$0xff]
    %v1042 = vld [vmem:[#allocation8 + $0xbc0] sm:$0xff]
    %v1043 = vld [vmem:[#allocation8 + $0xbc8] sm:$0xff]
    %v1044 = vld [vmem:[#allocation8 + $0xbd0] sm:$0xff]
    %v1045 = vld [vmem:[#allocation8 + $0xbd8] sm:$0xff]
    %v1046 = vld [vmem:[#allocation8 + $0xbe0] sm:$0xff]
    %v1047 = vld [vmem:[#allocation8 + $0xbe8] sm:$0xff]
    %v1048 = vld [vmem:[#allocation8 + $0xbf0] sm:$0xff]
    %v1049 = vld [vmem:[#allocation8 + $0xbf8] sm:$0xff]
    %v1050 = vld [vmem:[#allocation8 + $0xc00] sm:$0xff]
    %v1051 = vld [vmem:[#allocation8 + $0xc08] sm:$0xff]
    %v1052 = vld [vmem:[#allocation8 + $0xc10] sm:$0xff]
    %v1053 = vld [vmem:[#allocation8 + $0xc18] sm:$0xff]
    %v1054 = vld [vmem:[#allocation8 + $0xc20] sm:$0xff]
    %v1055 = vld [vmem:[#allocation8 + $0xc28] sm:$0xff]
    %v1056 = vld [vmem:[#allocation8 + $0xc30] sm:$0xff]
    %v1057 = vld [vmem:[#allocation8 + $0xc38] sm:$0xff]
    %v1058 = vld [vmem:[#allocation8 + $0xc40] sm:$0xff]
    %v1059 = vld [vmem:[#allocation8 + $0xc48] sm:$0xff]
    %v1060 = vld [vmem:[#allocation8 + $0xc50] sm:$0xff]
    %v1061 = vld [vmem:[#allocation8 + $0xc58] sm:$0xff]
    %v1062 = vld [vmem:[#allocation8 + $0xc60] sm:$0xff]
    %v1063 = vld [vmem:[#allocation8 + $0xc68] sm:$0xff]
    %v1064 = vld [vmem:[#allocation8 + $0xc70] sm:$0xff]
    %v1065 = vld [vmem:[#allocation8 + $0xc78] sm:$0xff]
    %v1066 = vld [vmem:[#allocation8 + $0xc80] sm:$0xff]
    %v1067 = vld [vmem:[#allocation8 + $0xc88] sm:$0xff]
    %v1068 = vld [vmem:[#allocation8 + $0xc90] sm:$0xff]
    %v1069 = vld [vmem:[#allocation8 + $0xc98] sm:$0xff]
    %v1070 = vld [vmem:[#allocation8 + $0xca0] sm:$0xff]
    %v1071 = vld [vmem:[#allocation8 + $0xca8] sm:$0xff]
    %v1072 = vld [vmem:[#allocation8 + $0xcb0] sm:$0xff]
    %v1073 = vld [vmem:[#allocation8 + $0xcb8] sm:$0xff]
    %v1074 = vld [vmem:[#allocation8 + $0xcc0] sm:$0xff]
    %v1075 = vld [vmem:[#allocation8 + $0xcc8] sm:$0xff]
    %v1076 = vld [vmem:[#allocation8 + $0xcd0] sm:$0xff]
    %v1077 = vld [vmem:[#allocation8 + $0xcd8] sm:$0xff]
    %v1078 = vld [vmem:[#allocation8 + $0xce0] sm:$0xff]
    %v1079 = vld [vmem:[#allocation8 + $0xce8] sm:$0xff]
    %v1080 = vld [vmem:[#allocation8 + $0xcf0] sm:$0xff]
    %v1081 = vld [vmem:[#allocation8 + $0xcf8] sm:$0xff]
    %v1082 = vld [vmem:[#allocation8 + $0xd00] sm:$0xff]
    %v1083 = vld [vmem:[#allocation8 + $0xd08] sm:$0xff]
    %v1084 = vld [vmem:[#allocation8 + $0xd10] sm:$0xff]
    %v1085 = vld [vmem:[#allocation8 + $0xd18] sm:$0xff]
    %v1086 = vld [vmem:[#allocation8 + $0xd20] sm:$0xff]
    %v1087 = vld [vmem:[#allocation8 + $0xd28] sm:$0xff]
    %v1088 = vld [vmem:[#allocation8 + $0xd30] sm:$0xff]
    %v1089 = vld [vmem:[#allocation8 + $0xd38] sm:$0xff]
    %v1090 = vld [vmem:[#allocation8 + $0xd40] sm:$0xff]
    %v1091 = vld [vmem:[#allocation8 + $0xd48] sm:$0xff]
    %v1092 = vld [vmem:[#allocation8 + $0xd50] sm:$0xff]
    %v1093 = vld [vmem:[#allocation8 + $0xd58] sm:$0xff]
    %v1094 = vld [vmem:[#allocation8 + $0xd60] sm:$0xff]
    %v1095 = vld [vmem:[#allocation8 + $0xd68] sm:$0xff]
    %v1096 = vld [vmem:[#allocation8 + $0xd70] sm:$0xff]
    %v1097 = vld [vmem:[#allocation8 + $0xd78] sm:$0xff]
    %v1098 = vld [vmem:[#allocation8 + $0xd80] sm:$0xff]
    %v1099 = vld [vmem:[#allocation8 + $0xd88] sm:$0xff]
    %v1100 = vld [vmem:[#allocation8 + $0xd90] sm:$0xff]
    %v1101 = vld [vmem:[#allocation8 + $0xd98] sm:$0xff]
    %v1102 = vld [vmem:[#allocation8 + $0xda0] sm:$0xff]
    %v1103 = vld [vmem:[#allocation8 + $0xda8] sm:$0xff]
    %v1104 = vld [vmem:[#allocation8 + $0xdb0] sm:$0xff]
    %v1105 = vld [vmem:[#allocation8 + $0xdb8] sm:$0xff]
    %v1106 = vld [vmem:[#allocation8 + $0xdc0] sm:$0xff]
    %v1107 = vld [vmem:[#allocation8 + $0xdc8] sm:$0xff]
    %v1108 = vld [vmem:[#allocation8 + $0xdd0] sm:$0xff]
    %v1109 = vld [vmem:[#allocation8 + $0xdd8] sm:$0xff]
    %v1110 = vld [vmem:[#allocation8 + $0xde0] sm:$0xff]
    %v1111 = vld [vmem:[#allocation8 + $0xde8] sm:$0xff]
    %v1112 = vld [vmem:[#allocation8 + $0xdf0] sm:$0xff]
    %v1113 = vld [vmem:[#allocation8 + $0xdf8] sm:$0xff]
    %v1114 = vld [vmem:[#allocation8 + $0xe00] sm:$0xff]
    %v1115 = vld [vmem:[#allocation8 + $0xe08] sm:$0xff]
    %v1116 = vld [vmem:[#allocation8 + $0xe10] sm:$0xff]
    %v1117 = vld [vmem:[#allocation8 + $0xe18] sm:$0xff]
    %v1118 = vld [vmem:[#allocation8 + $0xe20] sm:$0xff]
    %v1119 = vld [vmem:[#allocation8 + $0xe28] sm:$0xff]
    %v1120 = vld [vmem:[#allocation8 + $0xe30] sm:$0xff]
    %v1121 = vld [vmem:[#allocation8 + $0xe38] sm:$0xff]
    %v1122 = vld [vmem:[#allocation8 + $0xe40] sm:$0xff]
    %v1123 = vld [vmem:[#allocation8 + $0xe48] sm:$0xff]
    %v1124 = vld [vmem:[#allocation8 + $0xe50] sm:$0xff]
    %v1125 = vld [vmem:[#allocation8 + $0xe58] sm:$0xff]
    %v1126 = vld [vmem:[#allocation8 + $0xe60] sm:$0xff]
    %v1127 = vld [vmem:[#allocation8 + $0xe68] sm:$0xff]
    %v1128 = vld [vmem:[#allocation8 + $0xe70] sm:$0xff]
    %v1129 = vld [vmem:[#allocation8 + $0xe78] sm:$0xff]
    %v1130 = vld [vmem:[#allocation8 + $0xe80] sm:$0xff]
    %v1131 = vld [vmem:[#allocation8 + $0xe88] sm:$0xff]
    %v1132 = vld [vmem:[#allocation8 + $0xe90] sm:$0xff]
    %v1133 = vld [vmem:[#allocation8 + $0xe98] sm:$0xff]
    %v1134 = vld [vmem:[#allocation8 + $0xea0] sm:$0xff]
    %v1135 = vld [vmem:[#allocation8 + $0xea8] sm:$0xff]
    %v1136 = vld [vmem:[#allocation8 + $0xeb0] sm:$0xff]
    %v1137 = vld [vmem:[#allocation8 + $0xeb8] sm:$0xff]
    %v1138 = vld [vmem:[#allocation8 + $0xec0] sm:$0xff]
    %v1139 = vld [vmem:[#allocation8 + $0xec8] sm:$0xff]
    %v1140 = vld [vmem:[#allocation8 + $0xed0] sm:$0xff]
    %v1141 = vld [vmem:[#allocation8 + $0xed8] sm:$0xff]
    %v1142 = vld [vmem:[#allocation8 + $0xee0] sm:$0xff]
    %v1143 = vld [vmem:[#allocation8 + $0xee8] sm:$0xff]
    %v1144 = vld [vmem:[#allocation8 + $0xef0] sm:$0xff]
    %v1145 = vld [vmem:[#allocation8 + $0xef8] sm:$0xff]
    %v1146 = vld [vmem:[#allocation8 + $0xf00] sm:$0xff]
    %v1147 = vld [vmem:[#allocation8 + $0xf08] sm:$0xff]
    %v1148 = vld [vmem:[#allocation8 + $0xf10] sm:$0xff]
    %v1149 = vld [vmem:[#allocation8 + $0xf18] sm:$0xff]
    %v1150 = vld [vmem:[#allocation8 + $0xf20] sm:$0xff]
    %v1151 = vld [vmem:[#allocation8 + $0xf28] sm:$0xff]
    %v1152 = vld [vmem:[#allocation8 + $0xf30] sm:$0xff]
    %v1153 = vld [vmem:[#allocation8 + $0xf38] sm:$0xff]
    %v1154 = vld [vmem:[#allocation8 + $0xf40] sm:$0xff]
    %v1155 = vld [vmem:[#allocation8 + $0xf48] sm:$0xff]
    %v1156 = vld [vmem:[#allocation8 + $0xf50] sm:$0xff]
    %v1157 = vld [vmem:[#allocation8 + $0xf58] sm:$0xff]
    %v1158 = vld [vmem:[#allocation8 + $0xf60] sm:$0xff]
    %v1159 = vld [vmem:[#allocation8 + $0xf68] sm:$0xff]
    %v1160 = vld [vmem:[#allocation8 + $0xf70] sm:$0xff]
    %v1161 = vld [vmem:[#allocation8 + $0xf78] sm:$0xff]
    %v1162 = vld [vmem:[#allocation8 + $0xf80] sm:$0xff]
    %v1163 = vld [vmem:[#allocation8 + $0xf88] sm:$0xff]
    %v1164 = vld [vmem:[#allocation8 + $0xf90] sm:$0xff]
    %v1165 = vld [vmem:[#allocation8 + $0xf98] sm:$0xff]
    %v1166 = vld [vmem:[#allocation8 + $0xfa0] sm:$0xff]
    %v1167 = vld [vmem:[#allocation8 + $0xfa8] sm:$0xff]
    %v1168 = vld [vmem:[#allocation8 + $0xfb0] sm:$0xff]
    %v1169 = vld [vmem:[#allocation8 + $0xfb8] sm:$0xff]
    %v1170 = vld [vmem:[#allocation8 + $0xfc0] sm:$0xff]
    %v1171 = vld [vmem:[#allocation8 + $0xfc8] sm:$0xff]
    %v1172 = vld [vmem:[#allocation8 + $0xfd0] sm:$0xff]
    %v1173 = vld [vmem:[#allocation8 + $0xfd8] sm:$0xff]
    %v1174 = vld [vmem:[#allocation8 + $0xfe0] sm:$0xff]
    %v1175 = vld [vmem:[#allocation8 + $0xfe8] sm:$0xff]
    %v1176 = vld [vmem:[#allocation8 + $0xff0] sm:$0xff]
    %v1177 = vld [vmem:[#allocation8 + $0xff8] sm:$0xff]
    %v1178 = vld [vmem:[#allocation10] sm:$0xff]
    %v1180 = vperm.slane %v1178, 0
    %v1181 = vperm.slane %v1178, 1
    %v1182 = vperm.slane %v1178, 2
    %v1183 = vperm.slane %v1178, 3
    %v1184 = vperm.slane %v1178, 4
    %v1185 = vperm.slane %v1178, 5
    %v1186 = vperm.slane %v1178, 6
    %v1187 = vperm.slane %v1178, 7
    %1196 = vmatpush.msra.mxu0 %v786
    %1197 = vmatpush.msra.mxu0 %v778
    %1198 = vmatpush.msra.mxu0 %v770
    %1199 = vmatpush.msra.mxu0 %v762
    %1200 = vmatpush.msra.mxu0 %v754
    %1201 = vmatpush.msra.mxu0 %v746
    %1202 = vmatpush.msra.mxu0 %v738
    %1203 = vmatpush.msra.mxu0 %v730
    %1204 = vmatpush.msra.mxu0 %v722
    %1205 = vmatpush.msra.mxu0 %v714
    %1206 = vmatpush.msra.mxu0 %v706
    %1207 = vmatpush.msra.mxu0 %v698
    %1208 = vmatpush.msra.mxu0 %v690
    %1209 = vmatpush.msra.mxu0 %v682
    %1210 = vmatpush.msra.mxu0 %v674
    %1211 = vmatpush.msra.mxu0 %v666
    %1212 = vmatmul.f32.gmra.mxu0 %v662
    %v1213 = vpop.f32.mrf.mxu0
    %v1214 = vadd.f32 %v1180, %v1213
    %1215 = vdwg.mxu0
    %1216 = vmatpush.msra.mxu0 %v914
    %1217 = vmatpush.msra.mxu0 %v906
    %1218 = vmatpush.msra.mxu0 %v898
    %1219 = vmatpush.msra.mxu0 %v890
    %1220 = vmatpush.msra.mxu0 %v882
    %1221 = vmatpush.msra.mxu0 %v874
    %1222 = vmatpush.msra.mxu0 %v866
    %1223 = vmatpush.msra.mxu0 %v858
    %1224 = vmatpush.msra.mxu0 %v850
    %1225 = vmatpush.msra.mxu0 %v842
    %1226 = vmatpush.msra.mxu0 %v834
    %1227 = vmatpush.msra.mxu0 %v826
    %1228 = vmatpush.msra.mxu0 %v818
    %1229 = vmatpush.msra.mxu0 %v810
    %1230 = vmatpush.msra.mxu0 %v802
    %1231 = vmatpush.msra.mxu0 %v794
    %1232 = vmatmul.f32.gmra.mxu0 %v663
    %v1233 = vpop.f32.mrf.mxu0
    %v1234 = vadd.f32 %v1214, %v1233
    %1235 = vdwg.mxu0
    %1236 = vmatpush.msra.mxu0 %v1042
    %1237 = vmatpush.msra.mxu0 %v1034
    %1238 = vmatpush.msra.mxu0 %v1026
    %1239 = vmatpush.msra.mxu0 %v1018
    %1240 = vmatpush.msra.mxu0 %v1010
    %1241 = vmatpush.msra.mxu0 %v1002
    %1242 = vmatpush.msra.mxu0 %v994
    %1243 = vmatpush.msra.mxu0 %v986
    %1244 = vmatpush.msra.mxu0 %v978
    %1245 = vmatpush.msra.mxu0 %v970
    %1246 = vmatpush.msra.mxu0 %v962
    %1247 = vmatpush.msra.mxu0 %v954
    %1248 = vmatpush.msra.mxu0 %v946
    %1249 = vmatpush.msra.mxu0 %v938
    %1250 = vmatpush.msra.mxu0 %v930
    %1251 = vmatpush.msra.mxu0 %v922
    %1252 = vmatmul.f32.gmra.mxu0 %v664
    %v1253 = vpop.f32.mrf.mxu0
    %v1254 = vadd.f32 %v1234, %v1253
    %1255 = vdwg.mxu0
    %1256 = vmatpush.msra.mxu0 %v1170
    %1257 = vmatpush.msra.mxu0 %v1162
    %1258 = vmatpush.msra.mxu0 %v1154
    %1259 = vmatpush.msra.mxu0 %v1146
    %1260 = vmatpush.msra.mxu0 %v1138
    %1261 = vmatpush.msra.mxu0 %v1130
    %1262 = vmatpush.msra.mxu0 %v1122
    %1263 = vmatpush.msra.mxu0 %v1114
    %1264 = vmatpush.msra.mxu0 %v1106
    %1265 = vmatpush.msra.mxu0 %v1098
    %1266 = vmatpush.msra.mxu0 %v1090
    %1267 = vmatpush.msra.mxu0 %v1082
    %1268 = vmatpush.msra.mxu0 %v1074
    %1269 = vmatpush.msra.mxu0 %v1066
    %1270 = vmatpush.msra.mxu0 %v1058
    %1271 = vmatpush.msra.mxu0 %v1050
    %1272 = vmatmul.f32.gmra.mxu0 %v665
    %v1273 = vpop.f32.mrf.mxu0
    %v1274 = vadd.f32 %v1254, %v1273
    %1275 = vdwg.mxu0
    %1276 = vmatpush.msra.mxu0 %v787
    %1277 = vmatpush.msra.mxu0 %v779
    %1278 = vmatpush.msra.mxu0 %v771
    %1279 = vmatpush.msra.mxu0 %v763
    %1280 = vmatpush.msra.mxu0 %v755
    %1281 = vmatpush.msra.mxu0 %v747
    %1282 = vmatpush.msra.mxu0 %v739
    %1283 = vmatpush.msra.mxu0 %v731
    %1284 = vmatpush.msra.mxu0 %v723
    %1285 = vmatpush.msra.mxu0 %v715
    %1286 = vmatpush.msra.mxu0 %v707
    %1287 = vmatpush.msra.mxu0 %v699
    %1288 = vmatpush.msra.mxu0 %v691
    %1289 = vmatpush.msra.mxu0 %v683
    %1290 = vmatpush.msra.mxu0 %v675
    %1291 = vmatpush.msra.mxu0 %v667
    %1292 = vmatmul.f32.gmra.mxu0 %v662
    %v1293 = vpop.f32.mrf.mxu0
    %v1294 = vadd.f32 %v1181, %v1293
    %1295 = vdwg.mxu0
    %1296 = vmatpush.msra.mxu0 %v915
    %1297 = vmatpush.msra.mxu0 %v907
    %1298 = vmatpush.msra.mxu0 %v899
    %1299 = vmatpush.msra.mxu0 %v891
    %1300 = vmatpush.msra.mxu0 %v883
    %1301 = vmatpush.msra.mxu0 %v875
    %1302 = vmatpush.msra.mxu0 %v867
    %1303 = vmatpush.msra.mxu0 %v859
    %1304 = vmatpush.msra.mxu0 %v851
    %1305 = vmatpush.msra.mxu0 %v843
    %1306 = vmatpush.msra.mxu0 %v835
    %1307 = vmatpush.msra.mxu0 %v827
    %1308 = vmatpush.msra.mxu0 %v819
    %1309 = vmatpush.msra.mxu0 %v811
    %1310 = vmatpush.msra.mxu0 %v803
    %1311 = vmatpush.msra.mxu0 %v795
    %1312 = vmatmul.f32.gmra.mxu0 %v663
    %v1313 = vpop.f32.mrf.mxu0
    %v1314 = vadd.f32 %v1294, %v1313
    %1315 = vdwg.mxu0
    %1316 = vmatpush.msra.mxu0 %v1043
    %1317 = vmatpush.msra.mxu0 %v1035
    %1318 = vmatpush.msra.mxu0 %v1027
    %1319 = vmatpush.msra.mxu0 %v1019
    %1320 = vmatpush.msra.mxu0 %v1011
    %1321 = vmatpush.msra.mxu0 %v1003
    %1322 = vmatpush.msra.mxu0 %v995
    %1323 = vmatpush.msra.mxu0 %v987
    %1324 = vmatpush.msra.mxu0 %v979
    %1325 = vmatpush.msra.mxu0 %v971
    %1326 = vmatpush.msra.mxu0 %v963
    %1327 = vmatpush.msra.mxu0 %v955
    %1328 = vmatpush.msra.mxu0 %v947
    %1329 = vmatpush.msra.mxu0 %v939
    %1330 = vmatpush.msra.mxu0 %v931
    %1331 = vmatpush.msra.mxu0 %v923
    %1332 = vmatmul.f32.gmra.mxu0 %v664
    %v1333 = vpop.f32.mrf.mxu0
    %v1334 = vadd.f32 %v1314, %v1333
    %1335 = vdwg.mxu0
    %1336 = vmatpush.msra.mxu0 %v1171
    %1337 = vmatpush.msra.mxu0 %v1163
    %1338 = vmatpush.msra.mxu0 %v1155
    %1339 = vmatpush.msra.mxu0 %v1147
    %1340 = vmatpush.msra.mxu0 %v1139
    %1341 = vmatpush.msra.mxu0 %v1131
    %1342 = vmatpush.msra.mxu0 %v1123
    %1343 = vmatpush.msra.mxu0 %v1115
    %1344 = vmatpush.msra.mxu0 %v1107
    %1345 = vmatpush.msra.mxu0 %v1099
    %1346 = vmatpush.msra.mxu0 %v1091
    %1347 = vmatpush.msra.mxu0 %v1083
    %1348 = vmatpush.msra.mxu0 %v1075
    %1349 = vmatpush.msra.mxu0 %v1067
    %1350 = vmatpush.msra.mxu0 %v1059
    %1351 = vmatpush.msra.mxu0 %v1051
    %1352 = vmatmul.f32.gmra.mxu0 %v665
    %v1353 = vpop.f32.mrf.mxu0
    %v1354 = vadd.f32 %v1334, %v1353
    %1355 = vdwg.mxu0
    %1356 = vmatpush.msra.mxu0 %v788
    %1357 = vmatpush.msra.mxu0 %v780
    %1358 = vmatpush.msra.mxu0 %v772
    %1359 = vmatpush.msra.mxu0 %v764
    %1360 = vmatpush.msra.mxu0 %v756
    %1361 = vmatpush.msra.mxu0 %v748
    %1362 = vmatpush.msra.mxu0 %v740
    %1363 = vmatpush.msra.mxu0 %v732
    %1364 = vmatpush.msra.mxu0 %v724
    %1365 = vmatpush.msra.mxu0 %v716
    %1366 = vmatpush.msra.mxu0 %v708
    %1367 = vmatpush.msra.mxu0 %v700
    %1368 = vmatpush.msra.mxu0 %v692
    %1369 = vmatpush.msra.mxu0 %v684
    %1370 = vmatpush.msra.mxu0 %v676
    %1371 = vmatpush.msra.mxu0 %v668
    %1372 = vmatmul.f32.gmra.mxu0 %v662
    %v1373 = vpop.f32.mrf.mxu0
    %v1374 = vadd.f32 %v1182, %v1373
    %1375 = vdwg.mxu0
    %1376 = vmatpush.msra.mxu0 %v916
    %1377 = vmatpush.msra.mxu0 %v908
    %1378 = vmatpush.msra.mxu0 %v900
    %1379 = vmatpush.msra.mxu0 %v892
    %1380 = vmatpush.msra.mxu0 %v884
    %1381 = vmatpush.msra.mxu0 %v876
    %1382 = vmatpush.msra.mxu0 %v868
    %1383 = vmatpush.msra.mxu0 %v860
    %1384 = vmatpush.msra.mxu0 %v852
    %1385 = vmatpush.msra.mxu0 %v844
    %1386 = vmatpush.msra.mxu0 %v836
    %1387 = vmatpush.msra.mxu0 %v828
    %1388 = vmatpush.msra.mxu0 %v820
    %1389 = vmatpush.msra.mxu0 %v812
    %1390 = vmatpush.msra.mxu0 %v804
    %1391 = vmatpush.msra.mxu0 %v796
    %1392 = vmatmul.f32.gmra.mxu0 %v663
    %v1393 = vpop.f32.mrf.mxu0
    %v1394 = vadd.f32 %v1374, %v1393
    %1395 = vdwg.mxu0
    %1396 = vmatpush.msra.mxu0 %v1044
    %1397 = vmatpush.msra.mxu0 %v1036
    %1398 = vmatpush.msra.mxu0 %v1028
    %1399 = vmatpush.msra.mxu0 %v1020
    %1400 = vmatpush.msra.mxu0 %v1012
    %1401 = vmatpush.msra.mxu0 %v1004
    %1402 = vmatpush.msra.mxu0 %v996
    %1403 = vmatpush.msra.mxu0 %v988
    %1404 = vmatpush.msra.mxu0 %v980
    %1405 = vmatpush.msra.mxu0 %v972
    %1406 = vmatpush.msra.mxu0 %v964
    %1407 = vmatpush.msra.mxu0 %v956
    %1408 = vmatpush.msra.mxu0 %v948
    %1409 = vmatpush.msra.mxu0 %v940
    %1410 = vmatpush.msra.mxu0 %v932
    %1411 = vmatpush.msra.mxu0 %v924
    %1412 = vmatmul.f32.gmra.mxu0 %v664
    %v1413 = vpop.f32.mrf.mxu0
    %v1414 = vadd.f32 %v1394, %v1413
    %1415 = vdwg.mxu0
    %1416 = vmatpush.msra.mxu0 %v1172
    %1417 = vmatpush.msra.mxu0 %v1164
    %1418 = vmatpush.msra.mxu0 %v1156
    %1419 = vmatpush.msra.mxu0 %v1148
    %1420 = vmatpush.msra.mxu0 %v1140
    %1421 = vmatpush.msra.mxu0 %v1132
    %1422 = vmatpush.msra.mxu0 %v1124
    %1423 = vmatpush.msra.mxu0 %v1116
    %1424 = vmatpush.msra.mxu0 %v1108
    %1425 = vmatpush.msra.mxu0 %v1100
    %1426 = vmatpush.msra.mxu0 %v1092
    %1427 = vmatpush.msra.mxu0 %v1084
    %1428 = vmatpush.msra.mxu0 %v1076
    %1429 = vmatpush.msra.mxu0 %v1068
    %1430 = vmatpush.msra.mxu0 %v1060
    %1431 = vmatpush.msra.mxu0 %v1052
    %1432 = vmatmul.f32.gmra.mxu0 %v665
    %v1433 = vpop.f32.mrf.mxu0
    %v1434 = vadd.f32 %v1414, %v1433
    %1435 = vdwg.mxu0
    %1436 = vmatpush.msra.mxu0 %v789
    %1437 = vmatpush.msra.mxu0 %v781
    %1438 = vmatpush.msra.mxu0 %v773
    %1439 = vmatpush.msra.mxu0 %v765
    %1440 = vmatpush.msra.mxu0 %v757
    %1441 = vmatpush.msra.mxu0 %v749
    %1442 = vmatpush.msra.mxu0 %v741
    %1443 = vmatpush.msra.mxu0 %v733
    %1444 = vmatpush.msra.mxu0 %v725
    %1445 = vmatpush.msra.mxu0 %v717
    %1446 = vmatpush.msra.mxu0 %v709
    %1447 = vmatpush.msra.mxu0 %v701
    %1448 = vmatpush.msra.mxu0 %v693
    %1449 = vmatpush.msra.mxu0 %v685
    %1450 = vmatpush.msra.mxu0 %v677
    %1451 = vmatpush.msra.mxu0 %v669
    %1452 = vmatmul.f32.gmra.mxu0 %v662
    %v1453 = vpop.f32.mrf.mxu0
    %v1454 = vadd.f32 %v1183, %v1453
    %1455 = vdwg.mxu0
    %1456 = vmatpush.msra.mxu0 %v917
    %1457 = vmatpush.msra.mxu0 %v909
    %1458 = vmatpush.msra.mxu0 %v901
    %1459 = vmatpush.msra.mxu0 %v893
    %1460 = vmatpush.msra.mxu0 %v885
    %1461 = vmatpush.msra.mxu0 %v877
    %1462 = vmatpush.msra.mxu0 %v869
    %1463 = vmatpush.msra.mxu0 %v861
    %1464 = vmatpush.msra.mxu0 %v853
    %1465 = vmatpush.msra.mxu0 %v845
    %1466 = vmatpush.msra.mxu0 %v837
    %1467 = vmatpush.msra.mxu0 %v829
    %1468 = vmatpush.msra.mxu0 %v821
    %1469 = vmatpush.msra.mxu0 %v813
    %1470 = vmatpush.msra.mxu0 %v805
    %1471 = vmatpush.msra.mxu0 %v797
    %1472 = vmatmul.f32.gmra.mxu0 %v663
    %v1473 = vpop.f32.mrf.mxu0
    %v1474 = vadd.f32 %v1454, %v1473
    %1475 = vdwg.mxu0
    %1476 = vmatpush.msra.mxu0 %v1045
    %1477 = vmatpush.msra.mxu0 %v1037
    %1478 = vmatpush.msra.mxu0 %v1029
    %1479 = vmatpush.msra.mxu0 %v1021
    %1480 = vmatpush.msra.mxu0 %v1013
    %1481 = vmatpush.msra.mxu0 %v1005
    %1482 = vmatpush.msra.mxu0 %v997
    %1483 = vmatpush.msra.mxu0 %v989
    %1484 = vmatpush.msra.mxu0 %v981
    %1485 = vmatpush.msra.mxu0 %v973
    %1486 = vmatpush.msra.mxu0 %v965
    %1487 = vmatpush.msra.mxu0 %v957
    %1488 = vmatpush.msra.mxu0 %v949
    %1489 = vmatpush.msra.mxu0 %v941
    %1490 = vmatpush.msra.mxu0 %v933
    %1491 = vmatpush.msra.mxu0 %v925
    %1492 = vmatmul.f32.gmra.mxu0 %v664
    %v1493 = vpop.f32.mrf.mxu0
    %v1494 = vadd.f32 %v1474, %v1493
    %1495 = vdwg.mxu0
    %1496 = vmatpush.msra.mxu0 %v1173
    %1497 = vmatpush.msra.mxu0 %v1165
    %1498 = vmatpush.msra.mxu0 %v1157
    %1499 = vmatpush.msra.mxu0 %v1149
    %1500 = vmatpush.msra.mxu0 %v1141
    %1501 = vmatpush.msra.mxu0 %v1133
    %1502 = vmatpush.msra.mxu0 %v1125
    %1503 = vmatpush.msra.mxu0 %v1117
    %1504 = vmatpush.msra.mxu0 %v1109
    %1505 = vmatpush.msra.mxu0 %v1101
    %1506 = vmatpush.msra.mxu0 %v1093
    %1507 = vmatpush.msra.mxu0 %v1085
    %1508 = vmatpush.msra.mxu0 %v1077
    %1509 = vmatpush.msra.mxu0 %v1069
    %1510 = vmatpush.msra.mxu0 %v1061
    %1511 = vmatpush.msra.mxu0 %v1053
    %1512 = vmatmul.f32.gmra.mxu0 %v665
    %v1513 = vpop.f32.mrf.mxu0
    %v1514 = vadd.f32 %v1494, %v1513
    %1515 = vdwg.mxu0
    %1516 = vmatpush.msra.mxu0 %v790
    %1517 = vmatpush.msra.mxu0 %v782
    %1518 = vmatpush.msra.mxu0 %v774
    %1519 = vmatpush.msra.mxu0 %v766
    %1520 = vmatpush.msra.mxu0 %v758
    %1521 = vmatpush.msra.mxu0 %v750
    %1522 = vmatpush.msra.mxu0 %v742
    %1523 = vmatpush.msra.mxu0 %v734
    %1524 = vmatpush.msra.mxu0 %v726
    %1525 = vmatpush.msra.mxu0 %v718
    %1526 = vmatpush.msra.mxu0 %v710
    %1527 = vmatpush.msra.mxu0 %v702
    %1528 = vmatpush.msra.mxu0 %v694
    %1529 = vmatpush.msra.mxu0 %v686
    %1530 = vmatpush.msra.mxu0 %v678
    %1531 = vmatpush.msra.mxu0 %v670
    %1532 = vmatmul.f32.gmra.mxu0 %v662
    %v1533 = vpop.f32.mrf.mxu0
    %v1534 = vadd.f32 %v1184, %v1533
    %1535 = vdwg.mxu0
    %1536 = vmatpush.msra.mxu0 %v918
    %1537 = vmatpush.msra.mxu0 %v910
    %1538 = vmatpush.msra.mxu0 %v902
    %1539 = vmatpush.msra.mxu0 %v894
    %1540 = vmatpush.msra.mxu0 %v886
    %1541 = vmatpush.msra.mxu0 %v878
    %1542 = vmatpush.msra.mxu0 %v870
    %1543 = vmatpush.msra.mxu0 %v862
    %1544 = vmatpush.msra.mxu0 %v854
    %1545 = vmatpush.msra.mxu0 %v846
    %1546 = vmatpush.msra.mxu0 %v838
    %1547 = vmatpush.msra.mxu0 %v830
    %1548 = vmatpush.msra.mxu0 %v822
    %1549 = vmatpush.msra.mxu0 %v814
    %1550 = vmatpush.msra.mxu0 %v806
    %1551 = vmatpush.msra.mxu0 %v798
    %1552 = vmatmul.f32.gmra.mxu0 %v663
    %v1553 = vpop.f32.mrf.mxu0
    %v1554 = vadd.f32 %v1534, %v1553
    %1555 = vdwg.mxu0
    %1556 = vmatpush.msra.mxu0 %v1046
    %1557 = vmatpush.msra.mxu0 %v1038
    %1558 = vmatpush.msra.mxu0 %v1030
    %1559 = vmatpush.msra.mxu0 %v1022
    %1560 = vmatpush.msra.mxu0 %v1014
    %1561 = vmatpush.msra.mxu0 %v1006
    %1562 = vmatpush.msra.mxu0 %v998
    %1563 = vmatpush.msra.mxu0 %v990
    %1564 = vmatpush.msra.mxu0 %v982
    %1565 = vmatpush.msra.mxu0 %v974
    %1566 = vmatpush.msra.mxu0 %v966
    %1567 = vmatpush.msra.mxu0 %v958
    %1568 = vmatpush.msra.mxu0 %v950
    %1569 = vmatpush.msra.mxu0 %v942
    %1570 = vmatpush.msra.mxu0 %v934
    %1571 = vmatpush.msra.mxu0 %v926
    %1572 = vmatmul.f32.gmra.mxu0 %v664
    %v1573 = vpop.f32.mrf.mxu0
    %v1574 = vadd.f32 %v1554, %v1573
    %1575 = vdwg.mxu0
    %1576 = vmatpush.msra.mxu0 %v1174
    %1577 = vmatpush.msra.mxu0 %v1166
    %1578 = vmatpush.msra.mxu0 %v1158
    %1579 = vmatpush.msra.mxu0 %v1150
    %1580 = vmatpush.msra.mxu0 %v1142
    %1581 = vmatpush.msra.mxu0 %v1134
    %1582 = vmatpush.msra.mxu0 %v1126
    %1583 = vmatpush.msra.mxu0 %v1118
    %1584 = vmatpush.msra.mxu0 %v1110
    %1585 = vmatpush.msra.mxu0 %v1102
    %1586 = vmatpush.msra.mxu0 %v1094
    %1587 = vmatpush.msra.mxu0 %v1086
    %1588 = vmatpush.msra.mxu0 %v1078
    %1589 = vmatpush.msra.mxu0 %v1070
    %1590 = vmatpush.msra.mxu0 %v1062
    %1591 = vmatpush.msra.mxu0 %v1054
    %1592 = vmatmul.f32.gmra.mxu0 %v665
    %v1593 = vpop.f32.mrf.mxu0
    %v1594 = vadd.f32 %v1574, %v1593
    %1595 = vdwg.mxu0
    %1596 = vmatpush.msra.mxu0 %v791
    %1597 = vmatpush.msra.mxu0 %v783
    %1598 = vmatpush.msra.mxu0 %v775
    %1599 = vmatpush.msra.mxu0 %v767
    %1600 = vmatpush.msra.mxu0 %v759
    %1601 = vmatpush.msra.mxu0 %v751
    %1602 = vmatpush.msra.mxu0 %v743
    %1603 = vmatpush.msra.mxu0 %v735
    %1604 = vmatpush.msra.mxu0 %v727
    %1605 = vmatpush.msra.mxu0 %v719
    %1606 = vmatpush.msra.mxu0 %v711
    %1607 = vmatpush.msra.mxu0 %v703
    %1608 = vmatpush.msra.mxu0 %v695
    %1609 = vmatpush.msra.mxu0 %v687
    %1610 = vmatpush.msra.mxu0 %v679
    %1611 = vmatpush.msra.mxu0 %v671
    %1612 = vmatmul.f32.gmra.mxu0 %v662
    %v1613 = vpop.f32.mrf.mxu0
    %v1614 = vadd.f32 %v1185, %v1613
    %1615 = vdwg.mxu0
    %1616 = vmatpush.msra.mxu0 %v919
    %1617 = vmatpush.msra.mxu0 %v911
    %1618 = vmatpush.msra.mxu0 %v903
    %1619 = vmatpush.msra.mxu0 %v895
    %1620 = vmatpush.msra.mxu0 %v887
    %1621 = vmatpush.msra.mxu0 %v879
    %1622 = vmatpush.msra.mxu0 %v871
    %1623 = vmatpush.msra.mxu0 %v863
    %1624 = vmatpush.msra.mxu0 %v855
    %1625 = vmatpush.msra.mxu0 %v847
    %1626 = vmatpush.msra.mxu0 %v839
    %1627 = vmatpush.msra.mxu0 %v831
    %1628 = vmatpush.msra.mxu0 %v823
    %1629 = vmatpush.msra.mxu0 %v815
    %1630 = vmatpush.msra.mxu0 %v807
    %1631 = vmatpush.msra.mxu0 %v799
    %1632 = vmatmul.f32.gmra.mxu0 %v663
    %v1633 = vpop.f32.mrf.mxu0
    %v1634 = vadd.f32 %v1614, %v1633
    %1635 = vdwg.mxu0
    %1636 = vmatpush.msra.mxu0 %v1047
    %1637 = vmatpush.msra.mxu0 %v1039
    %1638 = vmatpush.msra.mxu0 %v1031
    %1639 = vmatpush.msra.mxu0 %v1023
    %1640 = vmatpush.msra.mxu0 %v1015
    %1641 = vmatpush.msra.mxu0 %v1007
    %1642 = vmatpush.msra.mxu0 %v999
    %1643 = vmatpush.msra.mxu0 %v991
    %1644 = vmatpush.msra.mxu0 %v983
    %1645 = vmatpush.msra.mxu0 %v975
    %1646 = vmatpush.msra.mxu0 %v967
    %1647 = vmatpush.msra.mxu0 %v959
    %1648 = vmatpush.msra.mxu0 %v951
    %1649 = vmatpush.msra.mxu0 %v943
    %1650 = vmatpush.msra.mxu0 %v935
    %1651 = vmatpush.msra.mxu0 %v927
    %1652 = vmatmul.f32.gmra.mxu0 %v664
    %v1653 = vpop.f32.mrf.mxu0
    %v1654 = vadd.f32 %v1634, %v1653
    %1655 = vdwg.mxu0
    %1656 = vmatpush.msra.mxu0 %v1175
    %1657 = vmatpush.msra.mxu0 %v1167
    %1658 = vmatpush.msra.mxu0 %v1159
    %1659 = vmatpush.msra.mxu0 %v1151
    %1660 = vmatpush.msra.mxu0 %v1143
    %1661 = vmatpush.msra.mxu0 %v1135
    %1662 = vmatpush.msra.mxu0 %v1127
    %1663 = vmatpush.msra.mxu0 %v1119
    %1664 = vmatpush.msra.mxu0 %v1111
    %1665 = vmatpush.msra.mxu0 %v1103
    %1666 = vmatpush.msra.mxu0 %v1095
    %1667 = vmatpush.msra.mxu0 %v1087
    %1668 = vmatpush.msra.mxu0 %v1079
    %1669 = vmatpush.msra.mxu0 %v1071
    %1670 = vmatpush.msra.mxu0 %v1063
    %1671 = vmatpush.msra.mxu0 %v1055
    %1672 = vmatmul.f32.gmra.mxu0 %v665
    %v1673 = vpop.f32.mrf.mxu0
    %v1674 = vadd.f32 %v1654, %v1673
    %1675 = vdwg.mxu0
    %1676 = vmatpush.msra.mxu0 %v792
    %1677 = vmatpush.msra.mxu0 %v784
    %1678 = vmatpush.msra.mxu0 %v776
    %1679 = vmatpush.msra.mxu0 %v768
    %1680 = vmatpush.msra.mxu0 %v760
    %1681 = vmatpush.msra.mxu0 %v752
    %1682 = vmatpush.msra.mxu0 %v744
    %1683 = vmatpush.msra.mxu0 %v736
    %1684 = vmatpush.msra.mxu0 %v728
    %1685 = vmatpush.msra.mxu0 %v720
    %1686 = vmatpush.msra.mxu0 %v712
    %1687 = vmatpush.msra.mxu0 %v704
    %1688 = vmatpush.msra.mxu0 %v696
    %1689 = vmatpush.msra.mxu0 %v688
    %1690 = vmatpush.msra.mxu0 %v680
    %1691 = vmatpush.msra.mxu0 %v672
    %1692 = vmatmul.f32.gmra.mxu0 %v662
    %v1693 = vpop.f32.mrf.mxu0
    %v1694 = vadd.f32 %v1186, %v1693
    %1695 = vdwg.mxu0
    %1696 = vmatpush.msra.mxu0 %v920
    %1697 = vmatpush.msra.mxu0 %v912
    %1698 = vmatpush.msra.mxu0 %v904
    %1699 = vmatpush.msra.mxu0 %v896
    %1700 = vmatpush.msra.mxu0 %v888
    %1701 = vmatpush.msra.mxu0 %v880
    %1702 = vmatpush.msra.mxu0 %v872
    %1703 = vmatpush.msra.mxu0 %v864
    %1704 = vmatpush.msra.mxu0 %v856
    %1705 = vmatpush.msra.mxu0 %v848
    %1706 = vmatpush.msra.mxu0 %v840
    %1707 = vmatpush.msra.mxu0 %v832
    %1708 = vmatpush.msra.mxu0 %v824
    %1709 = vmatpush.msra.mxu0 %v816
    %1710 = vmatpush.msra.mxu0 %v808
    %1711 = vmatpush.msra.mxu0 %v800
    %1712 = vmatmul.f32.gmra.mxu0 %v663
    %v1713 = vpop.f32.mrf.mxu0
    %v1714 = vadd.f32 %v1694, %v1713
    %1715 = vdwg.mxu0
    %1716 = vmatpush.msra.mxu0 %v1048
    %1717 = vmatpush.msra.mxu0 %v1040
    %1718 = vmatpush.msra.mxu0 %v1032
    %1719 = vmatpush.msra.mxu0 %v1024
    %1720 = vmatpush.msra.mxu0 %v1016
    %1721 = vmatpush.msra.mxu0 %v1008
    %1722 = vmatpush.msra.mxu0 %v1000
    %1723 = vmatpush.msra.mxu0 %v992
    %1724 = vmatpush.msra.mxu0 %v984
    %1725 = vmatpush.msra.mxu0 %v976
    %1726 = vmatpush.msra.mxu0 %v968
    %1727 = vmatpush.msra.mxu0 %v960
    %1728 = vmatpush.msra.mxu0 %v952
    %1729 = vmatpush.msra.mxu0 %v944
    %1730 = vmatpush.msra.mxu0 %v936
    %1731 = vmatpush.msra.mxu0 %v928
    %1732 = vmatmul.f32.gmra.mxu0 %v664
    %v1733 = vpop.f32.mrf.mxu0
    %v1734 = vadd.f32 %v1714, %v1733
    %1735 = vdwg.mxu0
    %1736 = vmatpush.msra.mxu0 %v1176
    %1737 = vmatpush.msra.mxu0 %v1168
    %1738 = vmatpush.msra.mxu0 %v1160
    %1739 = vmatpush.msra.mxu0 %v1152
    %1740 = vmatpush.msra.mxu0 %v1144
    %1741 = vmatpush.msra.mxu0 %v1136
    %1742 = vmatpush.msra.mxu0 %v1128
    %1743 = vmatpush.msra.mxu0 %v1120
    %1744 = vmatpush.msra.mxu0 %v1112
    %1745 = vmatpush.msra.mxu0 %v1104
    %1746 = vmatpush.msra.mxu0 %v1096
    %1747 = vmatpush.msra.mxu0 %v1088
    %1748 = vmatpush.msra.mxu0 %v1080
    %1749 = vmatpush.msra.mxu0 %v1072
    %1750 = vmatpush.msra.mxu0 %v1064
    %1751 = vmatpush.msra.mxu0 %v1056
    %1752 = vmatmul.f32.gmra.mxu0 %v665
    %v1753 = vpop.f32.mrf.mxu0
    %v1754 = vadd.f32 %v1734, %v1753
    %1755 = vdwg.mxu0
    %1756 = vmatpush.msra.mxu0 %v793
    %1757 = vmatpush.msra.mxu0 %v785
    %1758 = vmatpush.msra.mxu0 %v777
    %1759 = vmatpush.msra.mxu0 %v769
    %1760 = vmatpush.msra.mxu0 %v761
    %1761 = vmatpush.msra.mxu0 %v753
    %1762 = vmatpush.msra.mxu0 %v745
    %1763 = vmatpush.msra.mxu0 %v737
    %1764 = vmatpush.msra.mxu0 %v729
    %1765 = vmatpush.msra.mxu0 %v721
    %1766 = vmatpush.msra.mxu0 %v713
    %1767 = vmatpush.msra.mxu0 %v705
    %1768 = vmatpush.msra.mxu0 %v697
    %1769 = vmatpush.msra.mxu0 %v689
    %1770 = vmatpush.msra.mxu0 %v681
    %1771 = vmatpush.msra.mxu0 %v673
    %1772 = vmatmul.f32.gmra.mxu0 %v662
    %v1773 = vpop.f32.mrf.mxu0
    %v1774 = vadd.f32 %v1187, %v1773
    %1775 = vdwg.mxu0
    %1776 = vmatpush.msra.mxu0 %v921
    %1777 = vmatpush.msra.mxu0 %v913
    %1778 = vmatpush.msra.mxu0 %v905
    %1779 = vmatpush.msra.mxu0 %v897
    %1780 = vmatpush.msra.mxu0 %v889
    %1781 = vmatpush.msra.mxu0 %v881
    %1782 = vmatpush.msra.mxu0 %v873
    %1783 = vmatpush.msra.mxu0 %v865
    %1784 = vmatpush.msra.mxu0 %v857
    %1785 = vmatpush.msra.mxu0 %v849
    %1786 = vmatpush.msra.mxu0 %v841
    %1787 = vmatpush.msra.mxu0 %v833
    %1788 = vmatpush.msra.mxu0 %v825
    %1789 = vmatpush.msra.mxu0 %v817
    %1790 = vmatpush.msra.mxu0 %v809
    %1791 = vmatpush.msra.mxu0 %v801
    %1792 = vmatmul.f32.gmra.mxu0 %v663
    %v1793 = vpop.f32.mrf.mxu0
    %v1794 = vadd.f32 %v1774, %v1793
    %1795 = vdwg.mxu0
    %1796 = vmatpush.msra.mxu0 %v1049
    %1797 = vmatpush.msra.mxu0 %v1041
    %1798 = vmatpush.msra.mxu0 %v1033
    %1799 = vmatpush.msra.mxu0 %v1025
    %1800 = vmatpush.msra.mxu0 %v1017
    %1801 = vmatpush.msra.mxu0 %v1009
    %1802 = vmatpush.msra.mxu0 %v1001
    %1803 = vmatpush.msra.mxu0 %v993
    %1804 = vmatpush.msra.mxu0 %v985
    %1805 = vmatpush.msra.mxu0 %v977
    %1806 = vmatpush.msra.mxu0 %v969
    %1807 = vmatpush.msra.mxu0 %v961
    %1808 = vmatpush.msra.mxu0 %v953
    %1809 = vmatpush.msra.mxu0 %v945
    %1810 = vmatpush.msra.mxu0 %v937
    %1811 = vmatpush.msra.mxu0 %v929
    %1812 = vmatmul.f32.gmra.mxu0 %v664
    %v1813 = vpop.f32.mrf.mxu0
    %v1814 = vadd.f32 %v1794, %v1813
    %1815 = vdwg.mxu0
    %1816 = vmatpush.msra.mxu0 %v1177
    %1817 = vmatpush.msra.mxu0 %v1169
    %1818 = vmatpush.msra.mxu0 %v1161
    %1819 = vmatpush.msra.mxu0 %v1153
    %1820 = vmatpush.msra.mxu0 %v1145
    %1821 = vmatpush.msra.mxu0 %v1137
    %1822 = vmatpush.msra.mxu0 %v1129
    %1823 = vmatpush.msra.mxu0 %v1121
    %1824 = vmatpush.msra.mxu0 %v1113
    %1825 = vmatpush.msra.mxu0 %v1105
    %1826 = vmatpush.msra.mxu0 %v1097
    %1827 = vmatpush.msra.mxu0 %v1089
    %1828 = vmatpush.msra.mxu0 %v1081
    %1829 = vmatpush.msra.mxu0 %v1073
    %1830 = vmatpush.msra.mxu0 %v1065
    %1831 = vmatpush.msra.mxu0 %v1057
    %1832 = vmatmul.f32.gmra.mxu0 %v665
    %v1833 = vpop.f32.mrf.mxu0
    %v1834 = vadd.f32 %v1814, %v1833
    %1835 = vdwg.mxu0
    %v1836 = vmax.f32 %v1274, 0.0
    %v1837 = vmax.f32 %v1354, 0.0
    %v1838 = vmax.f32 %v1434, 0.0
    %v1839 = vmax.f32 %v1514, 0.0
    %v1840 = vmax.f32 %v1594, 0.0
    %v1841 = vmax.f32 %v1674, 0.0
    %v1842 = vmax.f32 %v1754, 0.0
    %v1843 = vmax.f32 %v1834, 0.0
    %v1844 = vmax.f32 %v1836, %v1838
    %v1845 = vmax.f32 %v1837, %v1839
    %v1846 = vmax.f32 %v1840, %v1842
    %v1847 = vmax.f32 %v1841, %v1843
    %v1848 = vmax.f32 %v1844, %v1846
    %v1849 = vmax.f32 %v1845, %v1847
    %v1850 = vld [vmem:[#allocation11] sm:$0xff]
    %v1851 = vld [vmem:[#allocation11 + $0x8] sm:$0xff]
    %v1852 = vld [vmem:[#allocation11 + $0x10] sm:$0xff]
    %v1853 = vld [vmem:[#allocation11 + $0x18] sm:$0xff]
    %v1854 = vld [vmem:[#allocation11 + $0x20] sm:$0xff]
    %v1855 = vld [vmem:[#allocation11 + $0x28] sm:$0xff]
    %v1856 = vld [vmem:[#allocation11 + $0x30] sm:$0xff]
    %v1857 = vld [vmem:[#allocation11 + $0x38] sm:$0xff]
    %v1858 = vld [vmem:[#allocation11 + $0x40] sm:$0xff]
    %v1859 = vld [vmem:[#allocation11 + $0x48] sm:$0xff]
    %v1860 = vld [vmem:[#allocation11 + $0x50] sm:$0xff]
    %v1861 = vld [vmem:[#allocation11 + $0x58] sm:$0xff]
    %v1862 = vld [vmem:[#allocation11 + $0x60] sm:$0xff]
    %v1863 = vld [vmem:[#allocation11 + $0x68] sm:$0xff]
    %v1864 = vld [vmem:[#allocation11 + $0x70] sm:$0xff]
    %v1865 = vld [vmem:[#allocation11 + $0x78] sm:$0xff]
    %v1866 = vld [vmem:[#allocation11 + $0x80] sm:$0xff]
    %v1867 = vld [vmem:[#allocation11 + $0x88] sm:$0xff]
    %v1868 = vld [vmem:[#allocation11 + $0x90] sm:$0xff]
    %v1869 = vld [vmem:[#allocation11 + $0x98] sm:$0xff]
    %v1870 = vld [vmem:[#allocation11 + $0xa0] sm:$0xff]
    %v1871 = vld [vmem:[#allocation11 + $0xa8] sm:$0xff]
    %v1872 = vld [vmem:[#allocation11 + $0xb0] sm:$0xff]
    %v1873 = vld [vmem:[#allocation11 + $0xb8] sm:$0xff]
    %v1874 = vld [vmem:[#allocation11 + $0xc0] sm:$0xff]
    %v1875 = vld [vmem:[#allocation11 + $0xc8] sm:$0xff]
    %v1876 = vld [vmem:[#allocation11 + $0xd0] sm:$0xff]
    %v1877 = vld [vmem:[#allocation11 + $0xd8] sm:$0xff]
    %v1878 = vld [vmem:[#allocation11 + $0xe0] sm:$0xff]
    %v1879 = vld [vmem:[#allocation11 + $0xe8] sm:$0xff]
    %v1880 = vld [vmem:[#allocation11 + $0xf0] sm:$0xff]
    %v1881 = vld [vmem:[#allocation11 + $0xf8] sm:$0xff]
    %v1882 = vld [vmem:[#allocation13] sm:$0x1]
    %v1884 = vperm.slane %v1882, 0
    %1886 = vmatpush.msra.mxu0 %v1865
    %1887 = vmatpush.msra.mxu0 %v1864
    %1888 = vmatpush.msra.mxu0 %v1863
    %1889 = vmatpush.msra.mxu0 %v1862
    %1890 = vmatpush.msra.mxu0 %v1861
    %1891 = vmatpush.msra.mxu0 %v1860
    %1892 = vmatpush.msra.mxu0 %v1859
    %1893 = vmatpush.msra.mxu0 %v1858
    %1894 = vmatpush.msra.mxu0 %v1857
    %1895 = vmatpush.msra.mxu0 %v1856
    %1896 = vmatpush.msra.mxu0 %v1855
    %1897 = vmatpush.msra.mxu0 %v1854
    %1898 = vmatpush.msra.mxu0 %v1853
    %1899 = vmatpush.msra.mxu0 %v1852
    %1900 = vmatpush.msra.mxu0 %v1851
    %1901 = vmatpush.msra.mxu0 %v1850
    %1902 = vmatmul.f32.gmra.mxu0 %v1848
    %v1903 = vpop.f32.mrf.mxu0
    %v1904 = vadd.f32 %v1884, %v1903
    %1905 = vdwg.mxu0
    %1906 = vmatpush.msra.mxu0 %v1881
    %1907 = vmatpush.msra.mxu0 %v1880
    %1908 = vmatpush.msra.mxu0 %v1879
    %1909 = vmatpush.msra.mxu0 %v1878
    %1910 = vmatpush.msra.mxu0 %v1877
    %1911 = vmatpush.msra.mxu0 %v1876
    %1912 = vmatpush.msra.mxu0 %v1875
    %1913 = vmatpush.msra.mxu0 %v1874
    %1914 = vmatpush.msra.mxu0 %v1873
    %1915 = vmatpush.msra.mxu0 %v1872
    %1916 = vmatpush.msra.mxu0 %v1871
    %1917 = vmatpush.msra.mxu0 %v1870
    %1918 = vmatpush.msra.mxu0 %v1869
    %1919 = vmatpush.msra.mxu0 %v1868
    %1920 = vmatpush.msra.mxu0 %v1867
    %1921 = vmatpush.msra.mxu0 %v1866
    %1922 = vmatmul.f32.gmra.mxu0 %v1849
    %v1923 = vpop.f32.mrf.mxu0
    %v1924 = vadd.f32 %v1904, %v1923
    %1925 = vdwg.mxu0
    %v1926 = vmax.f32 %v1924, 0.0
    %v1927 = vld [vmem:[#allocation14] sm:$0x1]
    %v1929 = vperm.slane %v1927, 0
    %v1931 = vmul.f32 %v1926, %v1929
    %1932 = vadd.xlane.f32.xlu0 %v1931
    %v1933 = vpop.xlane.xlu0 %1932
    %v1934 = vld [vmem:[#allocation2] sm:$0x1]
    %v1936 = vperm.slane %v1934, 0
    %v1938 = vadd.f32 %v1933, %v1936
    %v1939 = vsub.f32 0.0, %v1938
    %v1940 = vmul.f32 %v1939, 1.442695
    %v1941 = vpow.pop %v1940
    %v1942 = vadd.f32 %v1941, 1.0
    %v1943 = vrcp.pop %v1942
    %v1944 = vmin.f32 %v1943, 1.0
    %vm1945 = vcmask 7168
    %1946 = vst.msk [vmem:[%s9] sm:$0xff] %vm1945, %v1944
    // Predicated region
    $region70: #{tpu_custom_call.1} parent=1 // pred_check
      _
    $region71: #{tpu_custom_call.1} parent=1 // pred_check_branch
      %1948 = sbr.rel (0) target = $region73
    $region72: #{tpu_custom_call.1} parent=1 // pred_region
      _
    $region73: #{tpu_custom_call.1} parent=1 // pred_fallthru
      _
    // Predicated region
    $region74: #{tpu_custom_call.1} parent=1 // pred_check
      _
    $region75: #{tpu_custom_call.1} parent=1 // pred_check_branch
      %1950 = sbr.rel (0) target = $region77
    $region76: #{tpu_custom_call.1} parent=1 // pred_region
      _
    $region77: #{tpu_custom_call.1} parent=1 // pred_fallthru
      _
    %1951 = vsyncpa [#allocation4], 1
    %1952 = vsyncpa [#allocation6], 1
    %1953 = vsyncpa [#allocation9], 1
    %1954 = vsyncpa [#allocation12], 1
    %1955 = vsyncpa [#allocation15], 1

</llo_original>
